<compile_context>
chip_gen: v5e
topology: v5e:2x2
jax: 0.10.0
libtpu: 0.0.40
codegen_flags: <defaults>
</compile_context>

<pallas_src>
import functools

import jax
import jax.numpy as jnp
from jax.experimental import pallas as pl
from jax.experimental.pallas import tpu as pltpu


# ----------------------------------------------------------------------------
# Kernel
# ----------------------------------------------------------------------------
def enc_dec_kernel(
    gi_e_ref,      # (input_len, N, 3H)  precomputed encoder input gates (bias-folded)
    gi_d0_ref,     # (N, 3H)             decoder step-0 input gates (from x_last, bias-folded)
    whh_e_ref,     # (H, 3H)             encoder recurrent weights [r|z|n] lane-packed
    whh_d_ref,     # (H, 3H)             decoder recurrent weights [r|z|n] lane-packed
    w_big_ref,     # (H, 3H+F)           [w_lin@W_ih_d | w_lin] fused feedback + readout
    c_big_ref,     # (1, 3H+F)           fused biases for w_big
    b_hn_ref,      # (2, H)              [b_hn_e ; b_hn_d]  (n-gate hidden-path biases)
    out_ref,       # (N, target_len*F)
    *, input_len, target_len, hidden_dim, n_features,
):
    f32 = jnp.float32
    H = hidden_dim
    F = n_features
    N = gi_d0_ref.shape[0]

    # Weight slabs read once; packing keeps the live vreg count small (~12 vregs).
    whh_e = whh_e_ref[...]
    whh_d = whh_d_ref[...]
    w_big = w_big_ref[...]

    # Pre-broadcast biases once (hoisted out of the unrolled bodies).
    c_big = jnp.broadcast_to(c_big_ref[...], (N, 3 * H + F))
    b_hn_e = jnp.broadcast_to(b_hn_ref[0:1, :], (N, H))
    b_hn_d = jnp.broadcast_to(b_hn_ref[1:2, :], (N, H))

    def sigm(x):
        # sigma(x) == 0.5 * (1 + tanh(x/2)): one EUP push per sigmoid.
        return 0.5 * (jnp.tanh(0.5 * x) + 1.0)

    def gru_step(gi, gh, b_hn, h):
        # gi, gh: (N, 3H) lane-packed [r|z|n]
        g = gi + gh                                   # full-width VPU add
        r = sigm(g[:, :H])
        z = sigm(g[:, H:2 * H])
        n = jnp.tanh(gi[:, 2 * H:] + r * (gh[:, 2 * H:] + b_hn))
        return (1.0 - z) * n + z * h

    # ---- Encoder ----
    # Peeled t=0: h0 == 0, so gh == 0 and the recurrent matmul is skipped.
    gi0 = gi_e_ref[0]
    r0 = sigm(gi0[:, :H])
    z0 = sigm(gi0[:, H:2 * H])
    n0 = jnp.tanh(gi0[:, 2 * H:] + r0 * b_hn_e)
    h = (1.0 - z0) * n0

    for t in range(1, input_len):
        gh = jnp.dot(h, whh_e, preferred_element_type=f32)        # ONE matmul / step
        h = gru_step(gi_e_ref[t], gh, b_hn_e, h)

    # ---- Decoder: exactly 2 matmuls per autoregressive step ----
    gi = gi_d0_ref[...]
    for i in range(target_len):
        gh = jnp.dot(h, whh_d, preferred_element_type=f32)        # (N, 3H)
        h = gru_step(gi, gh, b_hn_d, h)
        # Fused feedback + readout: next-step input gates and linear output together.
        big = jnp.dot(h, w_big, preferred_element_type=f32) + c_big   # (N, 3H+F)
        out_ref[:, i * F:(i + 1) * F] = big[:, 3 * H:]                # readout lanes
        gi = big[:, :3 * H]                                           # next gi


# ----------------------------------------------------------------------------
# Wrapper: weight refactoring (lane packing, fusions, bias folding) + call
# ----------------------------------------------------------------------------
def encoder_decoder_v0(X, params, *, input_len, target_len, hidden_dim):
    N, L, F = X.shape
    H = hidden_dim
    assert L == input_len + target_len

    def split3(b):
        return b[..., :H], b[..., H:2 * H], b[..., 2 * H:]

    W_ih_e, W_hh_e = params["w_ih_e"], params["w_hh_e"]
    b_ih_e, b_hh_e = params["b_ih_e"], params["b_hh_e"]
    W_ih_d, W_hh_d = params["w_ih_d"], params["w_hh_d"]
    b_ih_d, b_hh_d = params["b_ih_d"], params["b_hh_d"]
    w_lin, b_lin = params["w_lin"], params["b_lin"]

    b_ir_e, b_iz_e, b_in_e = split3(b_ih_e)
    b_hr_e, b_hz_e, b_hn_e = split3(b_hh_e)
    b_ir_d, b_iz_d, b_in_d = split3(b_ih_d)
    b_hr_d, b_hz_d, b_hn_d = split3(b_hh_d)

    # Encoder input gates for the whole source sequence, lane-packed (T, N, 3H).
    # r/z gates fold both biases; n gate folds only b_in (b_hn stays inside r*(...)).
    src = jnp.transpose(X[:, :input_len, :], (1, 0, 2))               # (T, N, F)
    bias_gi_e = jnp.concatenate(
        [b_ir_e + b_hr_e, b_iz_e + b_hz_e, b_in_e], axis=-1)          # (1, 3H)
    gi_e = jnp.einsum("tnf,fg->tng", src, W_ih_e) + bias_gi_e         # (T, N, 3H)

    # Decoder step-0 input gates (first decoder input = last source element).
    x_last = X[:, input_len - 1, :]                                   # (N, F)
    bias_gi_d = jnp.concatenate(
        [b_ir_d + b_hr_d, b_iz_d + b_hz_d, b_in_d], axis=-1)          # (1, 3H)
    gi_d0 = x_last @ W_ih_d + bias_gi_d                               # (N, 3H)

    # Recurrent weights stay lane-packed [r|z|n]: (H, 3H).
    whh_e = W_hh_e
    whh_d = W_hh_d

    # Fused decoder feedback + readout:
    #   out       = h_new @ w_lin + b_lin
    #   gi_next   = out @ W_ih_d + bias_gi_d = h_new @ (w_lin @ W_ih_d) + (b_lin @ W_ih_d + bias_gi_d)
    w_big = jnp.concatenate([w_lin @ W_ih_d, w_lin], axis=-1)         # (H, 3H+F)
    c_big = jnp.concatenate([b_lin @ W_ih_d + bias_gi_d, b_lin], axis=-1)  # (1, 3H+F)

    b_hn = jnp.concatenate([b_hn_e, b_hn_d], axis=0)                  # (2, H)

    kernel = functools.partial(
        enc_dec_kernel,
        input_len=input_len,
        target_len=target_len,
        hidden_dim=H,
        n_features=F,
    )
    vmem = pl.BlockSpec(memory_space=pltpu.MemorySpace.VMEM)
    out_flat = pl.pallas_call(
        kernel,
        out_shape=jax.ShapeDtypeStruct((N, target_len * F), jnp.float32),
        in_specs=[vmem] * 7,
        out_specs=vmem,
    )(gi_e, gi_d0, whh_e, whh_d, w_big, c_big, b_hn)
    return out_flat.reshape(N, target_len, F)


# ----------------------------------------------------------------------------
# Pure-JAX reference (for correctness check)
# ----------------------------------------------------------------------------
def reference(X, params, *, input_len, target_len, hidden_dim):
    N, L, F = X.shape

    def gru(x_t, h, w_ih, w_hh, b_ih, b_hh):
        gi = x_t @ w_ih + b_ih
        gh = h @ w_hh + b_hh
        H = hidden_dim
        r = jax.nn.sigmoid(gi[:, :H] + gh[:, :H])
        z = jax.nn.sigmoid(gi[:, H:2 * H] + gh[:, H:2 * H])
        n = jnp.tanh(gi[:, 2 * H:] + r * gh[:, 2 * H:])
        return (1.0 - z) * n + z * h

    h = jnp.zeros((N, hidden_dim), jnp.float32)
    for t in range(input_len):
        h = gru(X[:, t, :], h,
                params["w_ih_e"], params["w_hh_e"],
                params["b_ih_e"], params["b_hh_e"])
    dec_in = X[:, input_len - 1, :]
    outs = []
    for _ in range(target_len):
        h = gru(dec_in, h,
                params["w_ih_d"], params["w_hh_d"],
                params["b_ih_d"], params["b_hh_d"])
        out = h @ params["w_lin"] + params["b_lin"]
        outs.append(out[:, None, :])
        dec_in = out
    return jnp.concatenate(outs, axis=1)


# ----------------------------------------------------------------------------
# Main
# ----------------------------------------------------------------------------
if __name__ == "__main__":
    N = 2           # batch
    F = 4           # n_features
    H = 32          # hidden_dim
    input_len = 8
    target_len = 4
    L = input_len + target_len

    key = jax.random.PRNGKey(0)
    keys = jax.random.split(key, 12)
    k_gru = 1.0 / jnp.sqrt(H)   # PyTorch GRU init scale
    k_lin = 1.0 / jnp.sqrt(H)   # PyTorch Linear(in=H) init scale

    def u(k, shape, scale):
        return jax.random.uniform(k, shape, jnp.float32, -scale, scale)

    # Weights stored as [in, out] (already transposed vs torch's [out, in]).
    params = {
        "w_ih_e": u(keys[0], (F, 3 * H), k_gru),
        "w_hh_e": u(keys[1], (H, 3 * H), k_gru),
        "b_ih_e": u(keys[2], (1, 3 * H), k_gru),
        "b_hh_e": u(keys[3], (1, 3 * H), k_gru),
        "w_ih_d": u(keys[4], (F, 3 * H), k_gru),
        "w_hh_d": u(keys[5], (H, 3 * H), k_gru),
        "b_ih_d": u(keys[6], (1, 3 * H), k_gru),
        "b_hh_d": u(keys[7], (1, 3 * H), k_gru),
        "w_lin":  u(keys[8], (H, F), k_lin),
        "b_lin":  u(keys[9], (1, F), k_lin),
    }

    X = jax.random.normal(keys[10], (N, L, F), jnp.float32)

    out = encoder_decoder_v0(
        X, params, input_len=input_len, target_len=target_len, hidden_dim=H
    )
    out = jax.block_until_ready(out)

    ref = reference(
        X, params, input_len=input_len, target_len=target_len, hidden_dim=H
    )
    assert out.shape == (N, target_len, F), out.shape
    assert jnp.allclose(out, ref, atol=2e-5, rtol=1e-5), (
        float(jnp.max(jnp.abs(out - ref)))
    )
    print("KERNEL_OK")
</pallas_src>

<mosaic_0001>
module attributes {stable_mosaic.version = 11 : i64} {
  func.func @enc_dec_kernel(%arg0: memref<8x2x96xf32, #tpu.memory_space<vmem>>, %arg1: memref<2x96xf32, #tpu.memory_space<vmem>>, %arg2: memref<32x96xf32, #tpu.memory_space<vmem>>, %arg3: memref<32x96xf32, #tpu.memory_space<vmem>>, %arg4: memref<32x100xf32, #tpu.memory_space<vmem>>, %arg5: memref<1x100xf32, #tpu.memory_space<vmem>>, %arg6: memref<2x32xf32, #tpu.memory_space<vmem>>, %arg7: memref<2x16xf32, #tpu.memory_space<vmem>>) attributes {dimension_semantics = [], scalar_prefetch = 0 : i64, scratch_operands = 0 : i64, tpu.core_type = #tpu.core_type<tc>} {
    %c0 = arith.constant 0 : index
    %c0_0 = arith.constant 0 : index
    %0 = vector.load %arg2[%c0, %c0_0] : memref<32x96xf32, #tpu.memory_space<vmem>>, vector<32x96xf32>
    %c0_1 = arith.constant 0 : index
    %c0_2 = arith.constant 0 : index
    %1 = vector.load %arg3[%c0_1, %c0_2] : memref<32x96xf32, #tpu.memory_space<vmem>>, vector<32x96xf32>
    %c0_3 = arith.constant 0 : index
    %c0_4 = arith.constant 0 : index
    %2 = vector.load %arg4[%c0_3, %c0_4] : memref<32x100xf32, #tpu.memory_space<vmem>>, vector<32x100xf32>
    %c0_5 = arith.constant 0 : index
    %c0_6 = arith.constant 0 : index
    %3 = vector.load %arg5[%c0_5, %c0_6] : memref<1x100xf32, #tpu.memory_space<vmem>>, vector<1x100xf32>
    %4 = vector.shape_cast %3 : vector<1x100xf32> to vector<1x100xf32>
    %5 = vector.broadcast %4 : vector<1x100xf32> to vector<2x100xf32>
    %c0_7 = arith.constant 0 : index
    %c0_8 = arith.constant 0 : index
    %6 = vector.load %arg6[%c0_7, %c0_8] : memref<2x32xf32, #tpu.memory_space<vmem>>, vector<1x32xf32>
    %7 = vector.shape_cast %6 : vector<1x32xf32> to vector<1x32xf32>
    %8 = vector.broadcast %7 : vector<1x32xf32> to vector<2x32xf32>
    %c1 = arith.constant 1 : index
    %c0_9 = arith.constant 0 : index
    %9 = vector.load %arg6[%c1, %c0_9] : memref<2x32xf32, #tpu.memory_space<vmem>>, vector<1x32xf32>
    %10 = vector.shape_cast %9 : vector<1x32xf32> to vector<1x32xf32>
    %11 = vector.broadcast %10 : vector<1x32xf32> to vector<2x32xf32>
    %c0_10 = arith.constant 0 : index
    %c0_11 = arith.constant 0 : index
    %c0_12 = arith.constant 0 : index
    %12 = vector.load %arg0[%c0_10, %c0_11, %c0_12] : memref<8x2x96xf32, #tpu.memory_space<vmem>>, vector<1x2x96xf32>
    %13 = vector.shape_cast %12 : vector<1x2x96xf32> to vector<2x96xf32>
    %14 = vector.extract_strided_slice %13 {offsets = [0, 0], sizes = [2, 32], strides = [1, 1]} : vector<2x96xf32> to vector<2x32xf32>
    %cst = arith.constant 5.000000e-01 : f32
    %15 = vector.broadcast %cst : f32 to vector<2x32xf32>
    %16 = arith.mulf %15, %14 : vector<2x32xf32>
    %17 = math.tanh %16 : vector<2x32xf32>
    %cst_13 = arith.constant 1.000000e+00 : f32
    %18 = vector.broadcast %cst_13 : f32 to vector<2x32xf32>
    %19 = arith.addf %17, %18 : vector<2x32xf32>
    %cst_14 = arith.constant 5.000000e-01 : f32
    %20 = vector.broadcast %cst_14 : f32 to vector<2x32xf32>
    %21 = arith.mulf %20, %19 : vector<2x32xf32>
    %22 = vector.extract_strided_slice %13 {offsets = [0, 32], sizes = [2, 32], strides = [1, 1]} : vector<2x96xf32> to vector<2x32xf32>
    %cst_15 = arith.constant 5.000000e-01 : f32
    %23 = vector.broadcast %cst_15 : f32 to vector<2x32xf32>
    %24 = arith.mulf %23, %22 : vector<2x32xf32>
    %25 = math.tanh %24 : vector<2x32xf32>
    %cst_16 = arith.constant 1.000000e+00 : f32
    %26 = vector.broadcast %cst_16 : f32 to vector<2x32xf32>
    %27 = arith.addf %25, %26 : vector<2x32xf32>
    %cst_17 = arith.constant 5.000000e-01 : f32
    %28 = vector.broadcast %cst_17 : f32 to vector<2x32xf32>
    %29 = arith.mulf %28, %27 : vector<2x32xf32>
    %30 = vector.extract_strided_slice %13 {offsets = [0, 64], sizes = [2, 32], strides = [1, 1]} : vector<2x96xf32> to vector<2x32xf32>
    %31 = arith.mulf %21, %8 : vector<2x32xf32>
    %32 = arith.addf %30, %31 : vector<2x32xf32>
    %33 = math.tanh %32 : vector<2x32xf32>
    %cst_18 = arith.constant 1.000000e+00 : f32
    %34 = vector.broadcast %cst_18 : f32 to vector<2x32xf32>
    %35 = arith.subf %34, %29 : vector<2x32xf32>
    %36 = arith.mulf %35, %33 : vector<2x32xf32>
    %cst_19 = arith.constant dense<0.000000e+00> : vector<2x96xf32>
    %37 = tpu.matmul %36, %0, %cst_19 {dimension_numbers = #tpu.dot_dimension_numbers<[1], [0], [0], [1], [0, 0, 1, 1], [], []>} : vector<2x32xf32>, vector<32x96xf32>, vector<2x96xf32> -> vector<2x96xf32>
    %c1_20 = arith.constant 1 : index
    %c0_21 = arith.constant 0 : index
    %c0_22 = arith.constant 0 : index
    %38 = vector.load %arg0[%c1_20, %c0_21, %c0_22] : memref<8x2x96xf32, #tpu.memory_space<vmem>>, vector<1x2x96xf32>
    %39 = vector.shape_cast %38 : vector<1x2x96xf32> to vector<2x96xf32>
    %40 = arith.addf %39, %37 : vector<2x96xf32>
    %41 = vector.extract_strided_slice %40 {offsets = [0, 0], sizes = [2, 32], strides = [1, 1]} : vector<2x96xf32> to vector<2x32xf32>
    %cst_23 = arith.constant 5.000000e-01 : f32
    %42 = vector.broadcast %cst_23 : f32 to vector<2x32xf32>
    %43 = arith.mulf %42, %41 : vector<2x32xf32>
    %44 = math.tanh %43 : vector<2x32xf32>
    %cst_24 = arith.constant 1.000000e+00 : f32
    %45 = vector.broadcast %cst_24 : f32 to vector<2x32xf32>
    %46 = arith.addf %44, %45 : vector<2x32xf32>
    %cst_25 = arith.constant 5.000000e-01 : f32
    %47 = vector.broadcast %cst_25 : f32 to vector<2x32xf32>
    %48 = arith.mulf %47, %46 : vector<2x32xf32>
    %49 = vector.extract_strided_slice %40 {offsets = [0, 32], sizes = [2, 32], strides = [1, 1]} : vector<2x96xf32> to vector<2x32xf32>
    %cst_26 = arith.constant 5.000000e-01 : f32
    %50 = vector.broadcast %cst_26 : f32 to vector<2x32xf32>
    %51 = arith.mulf %50, %49 : vector<2x32xf32>
    %52 = math.tanh %51 : vector<2x32xf32>
    %cst_27 = arith.constant 1.000000e+00 : f32
    %53 = vector.broadcast %cst_27 : f32 to vector<2x32xf32>
    %54 = arith.addf %52, %53 : vector<2x32xf32>
    %cst_28 = arith.constant 5.000000e-01 : f32
    %55 = vector.broadcast %cst_28 : f32 to vector<2x32xf32>
    %56 = arith.mulf %55, %54 : vector<2x32xf32>
    %57 = vector.extract_strided_slice %39 {offsets = [0, 64], sizes = [2, 32], strides = [1, 1]} : vector<2x96xf32> to vector<2x32xf32>
    %58 = vector.extract_strided_slice %37 {offsets = [0, 64], sizes = [2, 32], strides = [1, 1]} : vector<2x96xf32> to vector<2x32xf32>
    %59 = arith.addf %58, %8 : vector<2x32xf32>
    %60 = arith.mulf %48, %59 : vector<2x32xf32>
    %61 = arith.addf %57, %60 : vector<2x32xf32>
    %62 = math.tanh %61 : vector<2x32xf32>
    %cst_29 = arith.constant 1.000000e+00 : f32
    %63 = vector.broadcast %cst_29 : f32 to vector<2x32xf32>
    %64 = arith.subf %63, %56 : vector<2x32xf32>
    %65 = arith.mulf %64, %62 : vector<2x32xf32>
    %66 = arith.mulf %56, %36 : vector<2x32xf32>
    %67 = arith.addf %65, %66 : vector<2x32xf32>
    %cst_30 = arith.constant dense<0.000000e+00> : vector<2x96xf32>
    %68 = tpu.matmul %67, %0, %cst_30 {dimension_numbers = #tpu.dot_dimension_numbers<[1], [0], [0], [1], [0, 0, 1, 1], [], []>} : vector<2x32xf32>, vector<32x96xf32>, vector<2x96xf32> -> vector<2x96xf32>
    %c2 = arith.constant 2 : index
    %c0_31 = arith.constant 0 : index
    %c0_32 = arith.constant 0 : index
    %69 = vector.load %arg0[%c2, %c0_31, %c0_32] : memref<8x2x96xf32, #tpu.memory_space<vmem>>, vector<1x2x96xf32>
    %70 = vector.shape_cast %69 : vector<1x2x96xf32> to vector<2x96xf32>
    %71 = arith.addf %70, %68 : vector<2x96xf32>
    %72 = vector.extract_strided_slice %71 {offsets = [0, 0], sizes = [2, 32], strides = [1, 1]} : vector<2x96xf32> to vector<2x32xf32>
    %cst_33 = arith.constant 5.000000e-01 : f32
    %73 = vector.broadcast %cst_33 : f32 to vector<2x32xf32>
    %74 = arith.mulf %73, %72 : vector<2x32xf32>
    %75 = math.tanh %74 : vector<2x32xf32>
    %cst_34 = arith.constant 1.000000e+00 : f32
    %76 = vector.broadcast %cst_34 : f32 to vector<2x32xf32>
    %77 = arith.addf %75, %76 : vector<2x32xf32>
    %cst_35 = arith.constant 5.000000e-01 : f32
    %78 = vector.broadcast %cst_35 : f32 to vector<2x32xf32>
    %79 = arith.mulf %78, %77 : vector<2x32xf32>
    %80 = vector.extract_strided_slice %71 {offsets = [0, 32], sizes = [2, 32], strides = [1, 1]} : vector<2x96xf32> to vector<2x32xf32>
    %cst_36 = arith.constant 5.000000e-01 : f32
    %81 = vector.broadcast %cst_36 : f32 to vector<2x32xf32>
    %82 = arith.mulf %81, %80 : vector<2x32xf32>
    %83 = math.tanh %82 : vector<2x32xf32>
    %cst_37 = arith.constant 1.000000e+00 : f32
    %84 = vector.broadcast %cst_37 : f32 to vector<2x32xf32>
    %85 = arith.addf %83, %84 : vector<2x32xf32>
    %cst_38 = arith.constant 5.000000e-01 : f32
    %86 = vector.broadcast %cst_38 : f32 to vector<2x32xf32>
    %87 = arith.mulf %86, %85 : vector<2x32xf32>
    %88 = vector.extract_strided_slice %70 {offsets = [0, 64], sizes = [2, 32], strides = [1, 1]} : vector<2x96xf32> to vector<2x32xf32>
    %89 = vector.extract_strided_slice %68 {offsets = [0, 64], sizes = [2, 32], strides = [1, 1]} : vector<2x96xf32> to vector<2x32xf32>
    %90 = arith.addf %89, %8 : vector<2x32xf32>
    %91 = arith.mulf %79, %90 : vector<2x32xf32>
    %92 = arith.addf %88, %91 : vector<2x32xf32>
    %93 = math.tanh %92 : vector<2x32xf32>
    %cst_39 = arith.constant 1.000000e+00 : f32
    %94 = vector.broadcast %cst_39 : f32 to vector<2x32xf32>
    %95 = arith.subf %94, %87 : vector<2x32xf32>
    %96 = arith.mulf %95, %93 : vector<2x32xf32>
    %97 = arith.mulf %87, %67 : vector<2x32xf32>
    %98 = arith.addf %96, %97 : vector<2x32xf32>
    %cst_40 = arith.constant dense<0.000000e+00> : vector<2x96xf32>
    %99 = tpu.matmul %98, %0, %cst_40 {dimension_numbers = #tpu.dot_dimension_numbers<[1], [0], [0], [1], [0, 0, 1, 1], [], []>} : vector<2x32xf32>, vector<32x96xf32>, vector<2x96xf32> -> vector<2x96xf32>
    %c3 = arith.constant 3 : index
    %c0_41 = arith.constant 0 : index
    %c0_42 = arith.constant 0 : index
    %100 = vector.load %arg0[%c3, %c0_41, %c0_42] : memref<8x2x96xf32, #tpu.memory_space<vmem>>, vector<1x2x96xf32>
    %101 = vector.shape_cast %100 : vector<1x2x96xf32> to vector<2x96xf32>
    %102 = arith.addf %101, %99 : vector<2x96xf32>
    %103 = vector.extract_strided_slice %102 {offsets = [0, 0], sizes = [2, 32], strides = [1, 1]} : vector<2x96xf32> to vector<2x32xf32>
    %cst_43 = arith.constant 5.000000e-01 : f32
    %104 = vector.broadcast %cst_43 : f32 to vector<2x32xf32>
    %105 = arith.mulf %104, %103 : vector<2x32xf32>
    %106 = math.tanh %105 : vector<2x32xf32>
    %cst_44 = arith.constant 1.000000e+00 : f32
    %107 = vector.broadcast %cst_44 : f32 to vector<2x32xf32>
    %108 = arith.addf %106, %107 : vector<2x32xf32>
    %cst_45 = arith.constant 5.000000e-01 : f32
    %109 = vector.broadcast %cst_45 : f32 to vector<2x32xf32>
    %110 = arith.mulf %109, %108 : vector<2x32xf32>
    %111 = vector.extract_strided_slice %102 {offsets = [0, 32], sizes = [2, 32], strides = [1, 1]} : vector<2x96xf32> to vector<2x32xf32>
    %cst_46 = arith.constant 5.000000e-01 : f32
    %112 = vector.broadcast %cst_46 : f32 to vector<2x32xf32>
    %113 = arith.mulf %112, %111 : vector<2x32xf32>
    %114 = math.tanh %113 : vector<2x32xf32>
    %cst_47 = arith.constant 1.000000e+00 : f32
    %115 = vector.broadcast %cst_47 : f32 to vector<2x32xf32>
    %116 = arith.addf %114, %115 : vector<2x32xf32>
    %cst_48 = arith.constant 5.000000e-01 : f32
    %117 = vector.broadcast %cst_48 : f32 to vector<2x32xf32>
    %118 = arith.mulf %117, %116 : vector<2x32xf32>
    %119 = vector.extract_strided_slice %101 {offsets = [0, 64], sizes = [2, 32], strides = [1, 1]} : vector<2x96xf32> to vector<2x32xf32>
    %120 = vector.extract_strided_slice %99 {offsets = [0, 64], sizes = [2, 32], strides = [1, 1]} : vector<2x96xf32> to vector<2x32xf32>
    %121 = arith.addf %120, %8 : vector<2x32xf32>
    %122 = arith.mulf %110, %121 : vector<2x32xf32>
    %123 = arith.addf %119, %122 : vector<2x32xf32>
    %124 = math.tanh %123 : vector<2x32xf32>
    %cst_49 = arith.constant 1.000000e+00 : f32
    %125 = vector.broadcast %cst_49 : f32 to vector<2x32xf32>
    %126 = arith.subf %125, %118 : vector<2x32xf32>
    %127 = arith.mulf %126, %124 : vector<2x32xf32>
    %128 = arith.mulf %118, %98 : vector<2x32xf32>
    %129 = arith.addf %127, %128 : vector<2x32xf32>
    %cst_50 = arith.constant dense<0.000000e+00> : vector<2x96xf32>
    %130 = tpu.matmul %129, %0, %cst_50 {dimension_numbers = #tpu.dot_dimension_numbers<[1], [0], [0], [1], [0, 0, 1, 1], [], []>} : vector<2x32xf32>, vector<32x96xf32>, vector<2x96xf32> -> vector<2x96xf32>
    %c4 = arith.constant 4 : index
    %c0_51 = arith.constant 0 : index
    %c0_52 = arith.constant 0 : index
    %131 = vector.load %arg0[%c4, %c0_51, %c0_52] : memref<8x2x96xf32, #tpu.memory_space<vmem>>, vector<1x2x96xf32>
    %132 = vector.shape_cast %131 : vector<1x2x96xf32> to vector<2x96xf32>
    %133 = arith.addf %132, %130 : vector<2x96xf32>
    %134 = vector.extract_strided_slice %133 {offsets = [0, 0], sizes = [2, 32], strides = [1, 1]} : vector<2x96xf32> to vector<2x32xf32>
    %cst_53 = arith.constant 5.000000e-01 : f32
    %135 = vector.broadcast %cst_53 : f32 to vector<2x32xf32>
    %136 = arith.mulf %135, %134 : vector<2x32xf32>
    %137 = math.tanh %136 : vector<2x32xf32>
    %cst_54 = arith.constant 1.000000e+00 : f32
    %138 = vector.broadcast %cst_54 : f32 to vector<2x32xf32>
    %139 = arith.addf %137, %138 : vector<2x32xf32>
    %cst_55 = arith.constant 5.000000e-01 : f32
    %140 = vector.broadcast %cst_55 : f32 to vector<2x32xf32>
    %141 = arith.mulf %140, %139 : vector<2x32xf32>
    %142 = vector.extract_strided_slice %133 {offsets = [0, 32], sizes = [2, 32], strides = [1, 1]} : vector<2x96xf32> to vector<2x32xf32>
    %cst_56 = arith.constant 5.000000e-01 : f32
    %143 = vector.broadcast %cst_56 : f32 to vector<2x32xf32>
    %144 = arith.mulf %143, %142 : vector<2x32xf32>
    %145 = math.tanh %144 : vector<2x32xf32>
    %cst_57 = arith.constant 1.000000e+00 : f32
    %146 = vector.broadcast %cst_57 : f32 to vector<2x32xf32>
    %147 = arith.addf %145, %146 : vector<2x32xf32>
    %cst_58 = arith.constant 5.000000e-01 : f32
    %148 = vector.broadcast %cst_58 : f32 to vector<2x32xf32>
    %149 = arith.mulf %148, %147 : vector<2x32xf32>
    %150 = vector.extract_strided_slice %132 {offsets = [0, 64], sizes = [2, 32], strides = [1, 1]} : vector<2x96xf32> to vector<2x32xf32>
    %151 = vector.extract_strided_slice %130 {offsets = [0, 64], sizes = [2, 32], strides = [1, 1]} : vector<2x96xf32> to vector<2x32xf32>
    %152 = arith.addf %151, %8 : vector<2x32xf32>
    %153 = arith.mulf %141, %152 : vector<2x32xf32>
    %154 = arith.addf %150, %153 : vector<2x32xf32>
    %155 = math.tanh %154 : vector<2x32xf32>
    %cst_59 = arith.constant 1.000000e+00 : f32
    %156 = vector.broadcast %cst_59 : f32 to vector<2x32xf32>
    %157 = arith.subf %156, %149 : vector<2x32xf32>
    %158 = arith.mulf %157, %155 : vector<2x32xf32>
    %159 = arith.mulf %149, %129 : vector<2x32xf32>
    %160 = arith.addf %158, %159 : vector<2x32xf32>
    %cst_60 = arith.constant dense<0.000000e+00> : vector<2x96xf32>
    %161 = tpu.matmul %160, %0, %cst_60 {dimension_numbers = #tpu.dot_dimension_numbers<[1], [0], [0], [1], [0, 0, 1, 1], [], []>} : vector<2x32xf32>, vector<32x96xf32>, vector<2x96xf32> -> vector<2x96xf32>
    %c5 = arith.constant 5 : index
    %c0_61 = arith.constant 0 : index
    %c0_62 = arith.constant 0 : index
    %162 = vector.load %arg0[%c5, %c0_61, %c0_62] : memref<8x2x96xf32, #tpu.memory_space<vmem>>, vector<1x2x96xf32>
    %163 = vector.shape_cast %162 : vector<1x2x96xf32> to vector<2x96xf32>
    %164 = arith.addf %163, %161 : vector<2x96xf32>
    %165 = vector.extract_strided_slice %164 {offsets = [0, 0], sizes = [2, 32], strides = [1, 1]} : vector<2x96xf32> to vector<2x32xf32>
    %cst_63 = arith.constant 5.000000e-01 : f32
    %166 = vector.broadcast %cst_63 : f32 to vector<2x32xf32>
    %167 = arith.mulf %166, %165 : vector<2x32xf32>
    %168 = math.tanh %167 : vector<2x32xf32>
    %cst_64 = arith.constant 1.000000e+00 : f32
    %169 = vector.broadcast %cst_64 : f32 to vector<2x32xf32>
    %170 = arith.addf %168, %169 : vector<2x32xf32>
    %cst_65 = arith.constant 5.000000e-01 : f32
    %171 = vector.broadcast %cst_65 : f32 to vector<2x32xf32>
    %172 = arith.mulf %171, %170 : vector<2x32xf32>
    %173 = vector.extract_strided_slice %164 {offsets = [0, 32], sizes = [2, 32], strides = [1, 1]} : vector<2x96xf32> to vector<2x32xf32>
    %cst_66 = arith.constant 5.000000e-01 : f32
    %174 = vector.broadcast %cst_66 : f32 to vector<2x32xf32>
    %175 = arith.mulf %174, %173 : vector<2x32xf32>
    %176 = math.tanh %175 : vector<2x32xf32>
    %cst_67 = arith.constant 1.000000e+00 : f32
    %177 = vector.broadcast %cst_67 : f32 to vector<2x32xf32>
    %178 = arith.addf %176, %177 : vector<2x32xf32>
    %cst_68 = arith.constant 5.000000e-01 : f32
    %179 = vector.broadcast %cst_68 : f32 to vector<2x32xf32>
    %180 = arith.mulf %179, %178 : vector<2x32xf32>
    %181 = vector.extract_strided_slice %163 {offsets = [0, 64], sizes = [2, 32], strides = [1, 1]} : vector<2x96xf32> to vector<2x32xf32>
    %182 = vector.extract_strided_slice %161 {offsets = [0, 64], sizes = [2, 32], strides = [1, 1]} : vector<2x96xf32> to vector<2x32xf32>
    %183 = arith.addf %182, %8 : vector<2x32xf32>
    %184 = arith.mulf %172, %183 : vector<2x32xf32>
    %185 = arith.addf %181, %184 : vector<2x32xf32>
    %186 = math.tanh %185 : vector<2x32xf32>
    %cst_69 = arith.constant 1.000000e+00 : f32
    %187 = vector.broadcast %cst_69 : f32 to vector<2x32xf32>
    %188 = arith.subf %187, %180 : vector<2x32xf32>
    %189 = arith.mulf %188, %186 : vector<2x32xf32>
    %190 = arith.mulf %180, %160 : vector<2x32xf32>
    %191 = arith.addf %189, %190 : vector<2x32xf32>
    %cst_70 = arith.constant dense<0.000000e+00> : vector<2x96xf32>
    %192 = tpu.matmul %191, %0, %cst_70 {dimension_numbers = #tpu.dot_dimension_numbers<[1], [0], [0], [1], [0, 0, 1, 1], [], []>} : vector<2x32xf32>, vector<32x96xf32>, vector<2x96xf32> -> vector<2x96xf32>
    %c6 = arith.constant 6 : index
    %c0_71 = arith.constant 0 : index
    %c0_72 = arith.constant 0 : index
    %193 = vector.load %arg0[%c6, %c0_71, %c0_72] : memref<8x2x96xf32, #tpu.memory_space<vmem>>, vector<1x2x96xf32>
    %194 = vector.shape_cast %193 : vector<1x2x96xf32> to vector<2x96xf32>
    %195 = arith.addf %194, %192 : vector<2x96xf32>
    %196 = vector.extract_strided_slice %195 {offsets = [0, 0], sizes = [2, 32], strides = [1, 1]} : vector<2x96xf32> to vector<2x32xf32>
    %cst_73 = arith.constant 5.000000e-01 : f32
    %197 = vector.broadcast %cst_73 : f32 to vector<2x32xf32>
    %198 = arith.mulf %197, %196 : vector<2x32xf32>
    %199 = math.tanh %198 : vector<2x32xf32>
    %cst_74 = arith.constant 1.000000e+00 : f32
    %200 = vector.broadcast %cst_74 : f32 to vector<2x32xf32>
    %201 = arith.addf %199, %200 : vector<2x32xf32>
    %cst_75 = arith.constant 5.000000e-01 : f32
    %202 = vector.broadcast %cst_75 : f32 to vector<2x32xf32>
    %203 = arith.mulf %202, %201 : vector<2x32xf32>
    %204 = vector.extract_strided_slice %195 {offsets = [0, 32], sizes = [2, 32], strides = [1, 1]} : vector<2x96xf32> to vector<2x32xf32>
    %cst_76 = arith.constant 5.000000e-01 : f32
    %205 = vector.broadcast %cst_76 : f32 to vector<2x32xf32>
    %206 = arith.mulf %205, %204 : vector<2x32xf32>
    %207 = math.tanh %206 : vector<2x32xf32>
    %cst_77 = arith.constant 1.000000e+00 : f32
    %208 = vector.broadcast %cst_77 : f32 to vector<2x32xf32>
    %209 = arith.addf %207, %208 : vector<2x32xf32>
    %cst_78 = arith.constant 5.000000e-01 : f32
    %210 = vector.broadcast %cst_78 : f32 to vector<2x32xf32>
    %211 = arith.mulf %210, %209 : vector<2x32xf32>
    %212 = vector.extract_strided_slice %194 {offsets = [0, 64], sizes = [2, 32], strides = [1, 1]} : vector<2x96xf32> to vector<2x32xf32>
    %213 = vector.extract_strided_slice %192 {offsets = [0, 64], sizes = [2, 32], strides = [1, 1]} : vector<2x96xf32> to vector<2x32xf32>
    %214 = arith.addf %213, %8 : vector<2x32xf32>
    %215 = arith.mulf %203, %214 : vector<2x32xf32>
    %216 = arith.addf %212, %215 : vector<2x32xf32>
    %217 = math.tanh %216 : vector<2x32xf32>
    %cst_79 = arith.constant 1.000000e+00 : f32
    %218 = vector.broadcast %cst_79 : f32 to vector<2x32xf32>
    %219 = arith.subf %218, %211 : vector<2x32xf32>
    %220 = arith.mulf %219, %217 : vector<2x32xf32>
    %221 = arith.mulf %211, %191 : vector<2x32xf32>
    %222 = arith.addf %220, %221 : vector<2x32xf32>
    %cst_80 = arith.constant dense<0.000000e+00> : vector<2x96xf32>
    %223 = tpu.matmul %222, %0, %cst_80 {dimension_numbers = #tpu.dot_dimension_numbers<[1], [0], [0], [1], [0, 0, 1, 1], [], []>} : vector<2x32xf32>, vector<32x96xf32>, vector<2x96xf32> -> vector<2x96xf32>
    %c7 = arith.constant 7 : index
    %c0_81 = arith.constant 0 : index
    %c0_82 = arith.constant 0 : index
    %224 = vector.load %arg0[%c7, %c0_81, %c0_82] : memref<8x2x96xf32, #tpu.memory_space<vmem>>, vector<1x2x96xf32>
    %225 = vector.shape_cast %224 : vector<1x2x96xf32> to vector<2x96xf32>
    %226 = arith.addf %225, %223 : vector<2x96xf32>
    %227 = vector.extract_strided_slice %226 {offsets = [0, 0], sizes = [2, 32], strides = [1, 1]} : vector<2x96xf32> to vector<2x32xf32>
    %cst_83 = arith.constant 5.000000e-01 : f32
    %228 = vector.broadcast %cst_83 : f32 to vector<2x32xf32>
    %229 = arith.mulf %228, %227 : vector<2x32xf32>
    %230 = math.tanh %229 : vector<2x32xf32>
    %cst_84 = arith.constant 1.000000e+00 : f32
    %231 = vector.broadcast %cst_84 : f32 to vector<2x32xf32>
    %232 = arith.addf %230, %231 : vector<2x32xf32>
    %cst_85 = arith.constant 5.000000e-01 : f32
    %233 = vector.broadcast %cst_85 : f32 to vector<2x32xf32>
    %234 = arith.mulf %233, %232 : vector<2x32xf32>
    %235 = vector.extract_strided_slice %226 {offsets = [0, 32], sizes = [2, 32], strides = [1, 1]} : vector<2x96xf32> to vector<2x32xf32>
    %cst_86 = arith.constant 5.000000e-01 : f32
    %236 = vector.broadcast %cst_86 : f32 to vector<2x32xf32>
    %237 = arith.mulf %236, %235 : vector<2x32xf32>
    %238 = math.tanh %237 : vector<2x32xf32>
    %cst_87 = arith.constant 1.000000e+00 : f32
    %239 = vector.broadcast %cst_87 : f32 to vector<2x32xf32>
    %240 = arith.addf %238, %239 : vector<2x32xf32>
    %cst_88 = arith.constant 5.000000e-01 : f32
    %241 = vector.broadcast %cst_88 : f32 to vector<2x32xf32>
    %242 = arith.mulf %241, %240 : vector<2x32xf32>
    %243 = vector.extract_strided_slice %225 {offsets = [0, 64], sizes = [2, 32], strides = [1, 1]} : vector<2x96xf32> to vector<2x32xf32>
    %244 = vector.extract_strided_slice %223 {offsets = [0, 64], sizes = [2, 32], strides = [1, 1]} : vector<2x96xf32> to vector<2x32xf32>
    %245 = arith.addf %244, %8 : vector<2x32xf32>
    %246 = arith.mulf %234, %245 : vector<2x32xf32>
    %247 = arith.addf %243, %246 : vector<2x32xf32>
    %248 = math.tanh %247 : vector<2x32xf32>
    %cst_89 = arith.constant 1.000000e+00 : f32
    %249 = vector.broadcast %cst_89 : f32 to vector<2x32xf32>
    %250 = arith.subf %249, %242 : vector<2x32xf32>
    %251 = arith.mulf %250, %248 : vector<2x32xf32>
    %252 = arith.mulf %242, %222 : vector<2x32xf32>
    %253 = arith.addf %251, %252 : vector<2x32xf32>
    %c0_90 = arith.constant 0 : index
    %c0_91 = arith.constant 0 : index
    %254 = vector.load %arg1[%c0_90, %c0_91] : memref<2x96xf32, #tpu.memory_space<vmem>>, vector<2x96xf32>
    %cst_92 = arith.constant dense<0.000000e+00> : vector<2x96xf32>
    %255 = tpu.matmul %253, %1, %cst_92 {dimension_numbers = #tpu.dot_dimension_numbers<[1], [0], [0], [1], [0, 0, 1, 1], [], []>} : vector<2x32xf32>, vector<32x96xf32>, vector<2x96xf32> -> vector<2x96xf32>
    %256 = arith.addf %254, %255 : vector<2x96xf32>
    %257 = vector.extract_strided_slice %256 {offsets = [0, 0], sizes = [2, 32], strides = [1, 1]} : vector<2x96xf32> to vector<2x32xf32>
    %cst_93 = arith.constant 5.000000e-01 : f32
    %258 = vector.broadcast %cst_93 : f32 to vector<2x32xf32>
    %259 = arith.mulf %258, %257 : vector<2x32xf32>
    %260 = math.tanh %259 : vector<2x32xf32>
    %cst_94 = arith.constant 1.000000e+00 : f32
    %261 = vector.broadcast %cst_94 : f32 to vector<2x32xf32>
    %262 = arith.addf %260, %261 : vector<2x32xf32>
    %cst_95 = arith.constant 5.000000e-01 : f32
    %263 = vector.broadcast %cst_95 : f32 to vector<2x32xf32>
    %264 = arith.mulf %263, %262 : vector<2x32xf32>
    %265 = vector.extract_strided_slice %256 {offsets = [0, 32], sizes = [2, 32], strides = [1, 1]} : vector<2x96xf32> to vector<2x32xf32>
    %cst_96 = arith.constant 5.000000e-01 : f32
    %266 = vector.broadcast %cst_96 : f32 to vector<2x32xf32>
    %267 = arith.mulf %266, %265 : vector<2x32xf32>
    %268 = math.tanh %267 : vector<2x32xf32>
    %cst_97 = arith.constant 1.000000e+00 : f32
    %269 = vector.broadcast %cst_97 : f32 to vector<2x32xf32>
    %270 = arith.addf %268, %269 : vector<2x32xf32>
    %cst_98 = arith.constant 5.000000e-01 : f32
    %271 = vector.broadcast %cst_98 : f32 to vector<2x32xf32>
    %272 = arith.mulf %271, %270 : vector<2x32xf32>
    %273 = vector.extract_strided_slice %254 {offsets = [0, 64], sizes = [2, 32], strides = [1, 1]} : vector<2x96xf32> to vector<2x32xf32>
    %274 = vector.extract_strided_slice %255 {offsets = [0, 64], sizes = [2, 32], strides = [1, 1]} : vector<2x96xf32> to vector<2x32xf32>
    %275 = arith.addf %274, %11 : vector<2x32xf32>
    %276 = arith.mulf %264, %275 : vector<2x32xf32>
    %277 = arith.addf %273, %276 : vector<2x32xf32>
    %278 = math.tanh %277 : vector<2x32xf32>
    %cst_99 = arith.constant 1.000000e+00 : f32
    %279 = vector.broadcast %cst_99 : f32 to vector<2x32xf32>
    %280 = arith.subf %279, %272 : vector<2x32xf32>
    %281 = arith.mulf %280, %278 : vector<2x32xf32>
    %282 = arith.mulf %272, %253 : vector<2x32xf32>
    %283 = arith.addf %281, %282 : vector<2x32xf32>
    %cst_100 = arith.constant dense<0.000000e+00> : vector<2x100xf32>
    %284 = tpu.matmul %283, %2, %cst_100 {dimension_numbers = #tpu.dot_dimension_numbers<[1], [0], [0], [1], [0, 0, 1, 1], [], []>} : vector<2x32xf32>, vector<32x100xf32>, vector<2x100xf32> -> vector<2x100xf32>
    %285 = arith.addf %284, %5 : vector<2x100xf32>
    %286 = vector.extract_strided_slice %285 {offsets = [0, 96], sizes = [2, 4], strides = [1, 1]} : vector<2x100xf32> to vector<2x4xf32>
    %c0_101 = arith.constant 0 : index
    %c0_102 = arith.constant 0 : index
    %287 = vector.load %arg7[%c0_101, %c0_102] : memref<2x16xf32, #tpu.memory_space<vmem>>, vector<2x4xf32>
    tpu.vector_store %arg7[%c0_101, %c0_102], %286 {strides = array<i32>} : memref<2x16xf32, #tpu.memory_space<vmem>>, vector<2x4xf32>,
    %288 = vector.extract_strided_slice %285 {offsets = [0, 0], sizes = [2, 96], strides = [1, 1]} : vector<2x100xf32> to vector<2x96xf32>
    %cst_103 = arith.constant dense<0.000000e+00> : vector<2x96xf32>
    %289 = tpu.matmul %283, %1, %cst_103 {dimension_numbers = #tpu.dot_dimension_numbers<[1], [0], [0], [1], [0, 0, 1, 1], [], []>} : vector<2x32xf32>, vector<32x96xf32>, vector<2x96xf32> -> vector<2x96xf32>
    %290 = arith.addf %288, %289 : vector<2x96xf32>
    %291 = vector.extract_strided_slice %290 {offsets = [0, 0], sizes = [2, 32], strides = [1, 1]} : vector<2x96xf32> to vector<2x32xf32>
    %cst_104 = arith.constant 5.000000e-01 : f32
    %292 = vector.broadcast %cst_104 : f32 to vector<2x32xf32>
    %293 = arith.mulf %292, %291 : vector<2x32xf32>
    %294 = math.tanh %293 : vector<2x32xf32>
    %cst_105 = arith.constant 1.000000e+00 : f32
    %295 = vector.broadcast %cst_105 : f32 to vector<2x32xf32>
    %296 = arith.addf %294, %295 : vector<2x32xf32>
    %cst_106 = arith.constant 5.000000e-01 : f32
    %297 = vector.broadcast %cst_106 : f32 to vector<2x32xf32>
    %298 = arith.mulf %297, %296 : vector<2x32xf32>
    %299 = vector.extract_strided_slice %290 {offsets = [0, 32], sizes = [2, 32], strides = [1, 1]} : vector<2x96xf32> to vector<2x32xf32>
    %cst_107 = arith.constant 5.000000e-01 : f32
    %300 = vector.broadcast %cst_107 : f32 to vector<2x32xf32>
    %301 = arith.mulf %300, %299 : vector<2x32xf32>
    %302 = math.tanh %301 : vector<2x32xf32>
    %cst_108 = arith.constant 1.000000e+00 : f32
    %303 = vector.broadcast %cst_108 : f32 to vector<2x32xf32>
    %304 = arith.addf %302, %303 : vector<2x32xf32>
    %cst_109 = arith.constant 5.000000e-01 : f32
    %305 = vector.broadcast %cst_109 : f32 to vector<2x32xf32>
    %306 = arith.mulf %305, %304 : vector<2x32xf32>
    %307 = vector.extract_strided_slice %288 {offsets = [0, 64], sizes = [2, 32], strides = [1, 1]} : vector<2x96xf32> to vector<2x32xf32>
    %308 = vector.extract_strided_slice %289 {offsets = [0, 64], sizes = [2, 32], strides = [1, 1]} : vector<2x96xf32> to vector<2x32xf32>
    %309 = arith.addf %308, %11 : vector<2x32xf32>
    %310 = arith.mulf %298, %309 : vector<2x32xf32>
    %311 = arith.addf %307, %310 : vector<2x32xf32>
    %312 = math.tanh %311 : vector<2x32xf32>
    %cst_110 = arith.constant 1.000000e+00 : f32
    %313 = vector.broadcast %cst_110 : f32 to vector<2x32xf32>
    %314 = arith.subf %313, %306 : vector<2x32xf32>
    %315 = arith.mulf %314, %312 : vector<2x32xf32>
    %316 = arith.mulf %306, %283 : vector<2x32xf32>
    %317 = arith.addf %315, %316 : vector<2x32xf32>
    %cst_111 = arith.constant dense<0.000000e+00> : vector<2x100xf32>
    %318 = tpu.matmul %317, %2, %cst_111 {dimension_numbers = #tpu.dot_dimension_numbers<[1], [0], [0], [1], [0, 0, 1, 1], [], []>} : vector<2x32xf32>, vector<32x100xf32>, vector<2x100xf32> -> vector<2x100xf32>
    %319 = arith.addf %318, %5 : vector<2x100xf32>
    %320 = vector.extract_strided_slice %319 {offsets = [0, 96], sizes = [2, 4], strides = [1, 1]} : vector<2x100xf32> to vector<2x4xf32>
    %c0_112 = arith.constant 0 : index
    %c4_113 = arith.constant 4 : index
    %321 = vector.load %arg7[%c0_112, %c4_113] : memref<2x16xf32, #tpu.memory_space<vmem>>, vector<2x4xf32>
    tpu.vector_store %arg7[%c0_112, %c4_113], %320 {strides = array<i32>} : memref<2x16xf32, #tpu.memory_space<vmem>>, vector<2x4xf32>,
    %322 = vector.extract_strided_slice %319 {offsets = [0, 0], sizes = [2, 96], strides = [1, 1]} : vector<2x100xf32> to vector<2x96xf32>
    %cst_114 = arith.constant dense<0.000000e+00> : vector<2x96xf32>
    %323 = tpu.matmul %317, %1, %cst_114 {dimension_numbers = #tpu.dot_dimension_numbers<[1], [0], [0], [1], [0, 0, 1, 1], [], []>} : vector<2x32xf32>, vector<32x96xf32>, vector<2x96xf32> -> vector<2x96xf32>
    %324 = arith.addf %322, %323 : vector<2x96xf32>
    %325 = vector.extract_strided_slice %324 {offsets = [0, 0], sizes = [2, 32], strides = [1, 1]} : vector<2x96xf32> to vector<2x32xf32>
    %cst_115 = arith.constant 5.000000e-01 : f32
    %326 = vector.broadcast %cst_115 : f32 to vector<2x32xf32>
    %327 = arith.mulf %326, %325 : vector<2x32xf32>
    %328 = math.tanh %327 : vector<2x32xf32>
    %cst_116 = arith.constant 1.000000e+00 : f32
    %329 = vector.broadcast %cst_116 : f32 to vector<2x32xf32>
    %330 = arith.addf %328, %329 : vector<2x32xf32>
    %cst_117 = arith.constant 5.000000e-01 : f32
    %331 = vector.broadcast %cst_117 : f32 to vector<2x32xf32>
    %332 = arith.mulf %331, %330 : vector<2x32xf32>
    %333 = vector.extract_strided_slice %324 {offsets = [0, 32], sizes = [2, 32], strides = [1, 1]} : vector<2x96xf32> to vector<2x32xf32>
    %cst_118 = arith.constant 5.000000e-01 : f32
    %334 = vector.broadcast %cst_118 : f32 to vector<2x32xf32>
    %335 = arith.mulf %334, %333 : vector<2x32xf32>
    %336 = math.tanh %335 : vector<2x32xf32>
    %cst_119 = arith.constant 1.000000e+00 : f32
    %337 = vector.broadcast %cst_119 : f32 to vector<2x32xf32>
    %338 = arith.addf %336, %337 : vector<2x32xf32>
    %cst_120 = arith.constant 5.000000e-01 : f32
    %339 = vector.broadcast %cst_120 : f32 to vector<2x32xf32>
    %340 = arith.mulf %339, %338 : vector<2x32xf32>
    %341 = vector.extract_strided_slice %322 {offsets = [0, 64], sizes = [2, 32], strides = [1, 1]} : vector<2x96xf32> to vector<2x32xf32>
    %342 = vector.extract_strided_slice %323 {offsets = [0, 64], sizes = [2, 32], strides = [1, 1]} : vector<2x96xf32> to vector<2x32xf32>
    %343 = arith.addf %342, %11 : vector<2x32xf32>
    %344 = arith.mulf %332, %343 : vector<2x32xf32>
    %345 = arith.addf %341, %344 : vector<2x32xf32>
    %346 = math.tanh %345 : vector<2x32xf32>
    %cst_121 = arith.constant 1.000000e+00 : f32
    %347 = vector.broadcast %cst_121 : f32 to vector<2x32xf32>
    %348 = arith.subf %347, %340 : vector<2x32xf32>
    %349 = arith.mulf %348, %346 : vector<2x32xf32>
    %350 = arith.mulf %340, %317 : vector<2x32xf32>
    %351 = arith.addf %349, %350 : vector<2x32xf32>
    %cst_122 = arith.constant dense<0.000000e+00> : vector<2x100xf32>
    %352 = tpu.matmul %351, %2, %cst_122 {dimension_numbers = #tpu.dot_dimension_numbers<[1], [0], [0], [1], [0, 0, 1, 1], [], []>} : vector<2x32xf32>, vector<32x100xf32>, vector<2x100xf32> -> vector<2x100xf32>
    %353 = arith.addf %352, %5 : vector<2x100xf32>
    %354 = vector.extract_strided_slice %353 {offsets = [0, 96], sizes = [2, 4], strides = [1, 1]} : vector<2x100xf32> to vector<2x4xf32>
    %c0_123 = arith.constant 0 : index
    %c8 = arith.constant 8 : index
    %355 = vector.load %arg7[%c0_123, %c8] : memref<2x16xf32, #tpu.memory_space<vmem>>, vector<2x4xf32>
    tpu.vector_store %arg7[%c0_123, %c8], %354 {strides = array<i32>} : memref<2x16xf32, #tpu.memory_space<vmem>>, vector<2x4xf32>,
    %356 = vector.extract_strided_slice %353 {offsets = [0, 0], sizes = [2, 96], strides = [1, 1]} : vector<2x100xf32> to vector<2x96xf32>
    %cst_124 = arith.constant dense<0.000000e+00> : vector<2x96xf32>
    %357 = tpu.matmul %351, %1, %cst_124 {dimension_numbers = #tpu.dot_dimension_numbers<[1], [0], [0], [1], [0, 0, 1, 1], [], []>} : vector<2x32xf32>, vector<32x96xf32>, vector<2x96xf32> -> vector<2x96xf32>
    %358 = arith.addf %356, %357 : vector<2x96xf32>
    %359 = vector.extract_strided_slice %358 {offsets = [0, 0], sizes = [2, 32], strides = [1, 1]} : vector<2x96xf32> to vector<2x32xf32>
    %cst_125 = arith.constant 5.000000e-01 : f32
    %360 = vector.broadcast %cst_125 : f32 to vector<2x32xf32>
    %361 = arith.mulf %360, %359 : vector<2x32xf32>
    %362 = math.tanh %361 : vector<2x32xf32>
    %cst_126 = arith.constant 1.000000e+00 : f32
    %363 = vector.broadcast %cst_126 : f32 to vector<2x32xf32>
    %364 = arith.addf %362, %363 : vector<2x32xf32>
    %cst_127 = arith.constant 5.000000e-01 : f32
    %365 = vector.broadcast %cst_127 : f32 to vector<2x32xf32>
    %366 = arith.mulf %365, %364 : vector<2x32xf32>
    %367 = vector.extract_strided_slice %358 {offsets = [0, 32], sizes = [2, 32], strides = [1, 1]} : vector<2x96xf32> to vector<2x32xf32>
    %cst_128 = arith.constant 5.000000e-01 : f32
    %368 = vector.broadcast %cst_128 : f32 to vector<2x32xf32>
    %369 = arith.mulf %368, %367 : vector<2x32xf32>
    %370 = math.tanh %369 : vector<2x32xf32>
    %cst_129 = arith.constant 1.000000e+00 : f32
    %371 = vector.broadcast %cst_129 : f32 to vector<2x32xf32>
    %372 = arith.addf %370, %371 : vector<2x32xf32>
    %cst_130 = arith.constant 5.000000e-01 : f32
    %373 = vector.broadcast %cst_130 : f32 to vector<2x32xf32>
    %374 = arith.mulf %373, %372 : vector<2x32xf32>
    %375 = vector.extract_strided_slice %356 {offsets = [0, 64], sizes = [2, 32], strides = [1, 1]} : vector<2x96xf32> to vector<2x32xf32>
    %376 = vector.extract_strided_slice %357 {offsets = [0, 64], sizes = [2, 32], strides = [1, 1]} : vector<2x96xf32> to vector<2x32xf32>
    %377 = arith.addf %376, %11 : vector<2x32xf32>
    %378 = arith.mulf %366, %377 : vector<2x32xf32>
    %379 = arith.addf %375, %378 : vector<2x32xf32>
    %380 = math.tanh %379 : vector<2x32xf32>
    %cst_131 = arith.constant 1.000000e+00 : f32
    %381 = vector.broadcast %cst_131 : f32 to vector<2x32xf32>
    %382 = arith.subf %381, %374 : vector<2x32xf32>
    %383 = arith.mulf %382, %380 : vector<2x32xf32>
    %384 = arith.mulf %374, %351 : vector<2x32xf32>
    %385 = arith.addf %383, %384 : vector<2x32xf32>
    %cst_132 = arith.constant dense<0.000000e+00> : vector<2x100xf32>
    %386 = tpu.matmul %385, %2, %cst_132 {dimension_numbers = #tpu.dot_dimension_numbers<[1], [0], [0], [1], [0, 0, 1, 1], [], []>} : vector<2x32xf32>, vector<32x100xf32>, vector<2x100xf32> -> vector<2x100xf32>
    %387 = arith.addf %386, %5 : vector<2x100xf32>
    %388 = vector.extract_strided_slice %387 {offsets = [0, 96], sizes = [2, 4], strides = [1, 1]} : vector<2x100xf32> to vector<2x4xf32>
    %c0_133 = arith.constant 0 : index
    %c12 = arith.constant 12 : index
    %389 = vector.load %arg7[%c0_133, %c12] : memref<2x16xf32, #tpu.memory_space<vmem>>, vector<2x4xf32>
    tpu.vector_store %arg7[%c0_133, %c12], %388 {strides = array<i32>} : memref<2x16xf32, #tpu.memory_space<vmem>>, vector<2x4xf32>,
    return
  }
}

</mosaic_0001>

<llo_original>
// kernel: tpu_custom_call.1
$region0: #{tpu_custom_call.1}
  #allocation0 [shape = 'u32[]', space=smem, size = 0x4, offset = 0x4, fixed_abs, tag = 'smem constant byte address 0x4 - core index']
  #allocation1 [shape = 'u32[72,128]{1,0:T(1,128)}', space=vmem, size = 0x9000, scoped, tag = 'internal scratch']
  %s0 = inlined_call_operand.hbm [shape: f32[8,2,96], index: 0, kind: input, shape index: {}]
  %s1 = inlined_call_operand.hbm [shape: f32[2,96], index: 1, kind: input, shape index: {}]
  %s2 = inlined_call_operand.hbm [shape: f32[32,96], index: 2, kind: input, shape index: {}]
  %s3 = inlined_call_operand.hbm [shape: f32[32,96], index: 3, kind: input, shape index: {}]
  %s4 = inlined_call_operand.hbm [shape: f32[32,100], index: 4, kind: input, shape index: {}]
  %s5 = inlined_call_operand.vmem [shape: f32[1,100], index: 5, kind: input, shape index: {}]
  %s6 = inlined_call_operand.vmem [shape: f32[2,32], index: 6, kind: input, shape index: {}]
  %s7 = inlined_call_operand.hbm [shape: f32[2,16], index: 7, kind: output, shape index: {}]
  %s8 = sld [smem:[#allocation0]]
  $region58: #{tpu_custom_call.1} parent=0
    _
  %s10 = ssub.s32 1, %s8
  %s11 = scalar_select 0, %s10, %s8
  $region1: #{tpu_custom_call.1} parent=0
    #allocation2 [shape = 'u8[8192]{0}', space=vmem, size = 0x2000, scoped, tag = 'input window, operand 0, single buffered']
    #allocation3 [shape = 's32[1]{0}', space=sflag, size = 0x4, scoped, tag = 'scoped memory for tpu_custom_call.1']
    #allocation4 [shape = 's32[1]{0}', space=sflag, size = 0x4, scoped, tag = 'scoped memory for tpu_custom_call.1']
    #allocation5 [shape = 'u8[1024]{0}', space=vmem, size = 0x400, scoped, tag = 'input window, operand 1, single buffered']
    #allocation6 [shape = 's32[1]{0}', space=sflag, size = 0x4, scoped, tag = 'scoped memory for tpu_custom_call.1']
    #allocation7 [shape = 'u8[16384]{0}', space=vmem, size = 0x4000, scoped, tag = 'input window, operand 2, single buffered']
    #allocation8 [shape = 'u8[16384]{0}', space=vmem, size = 0x4000, scoped, tag = 'input window, operand 3, single buffered']
    #allocation9 [shape = 's32[1]{0}', space=sflag, size = 0x4, scoped, tag = 'scoped memory for tpu_custom_call.1']
    #allocation10 [shape = 'u8[16384]{0}', space=vmem, size = 0x4000, scoped, tag = 'input window, operand 4, single buffered']
    #allocation11 [shape = 'u8[1024]{0}', space=vmem, size = 0x400, scoped, tag = 'output window, operand 0, single buffered']
    %12 = vsyncpa [#allocation3], 0
    %13 = vsyncpa [#allocation6], 0
    %14 = vsyncpa [#allocation9], 0
    %15 = vsyncpa [#allocation4], 0
    // Predicated region
    $region2: #{tpu_custom_call.1} parent=1 // pred_check
      _
    $region3: #{tpu_custom_call.1} parent=1 // pred_check_branch
      %17 = sbr.rel (0) target = $region5
    $region4: #{tpu_custom_call.1} parent=1 // pred_region
      %19 = vsyncadd [#allocation3], 0
      %s20 = sshll.u32 %s0, 4
      %s21 = int_to_ptr.hbm [resolvable:$true] %s20
      %s22 = sshll.u32 [#allocation2], 4
      %s23 = int_to_ptr.vmem [resolvable:$true] %s22
      %28 = dma.hbm_to_vmem [thread:$0]  %s21, 256, %s23, [#allocation3], 32, 32, 2
    $region5: #{tpu_custom_call.1} parent=1 // pred_fallthru
      _
    // Predicated region
    $region6: #{tpu_custom_call.1} parent=1 // pred_check
      _
    $region7: #{tpu_custom_call.1} parent=1 // pred_check_branch
      %30 = sbr.rel (0) target = $region9
    $region8: #{tpu_custom_call.1} parent=1 // pred_region
      %32 = vsyncadd [#allocation6], 0
      %s34 = sshll.u32 %s1, 4
      %s35 = int_to_ptr.hbm [resolvable:$true] %s34
      %s36 = sshll.u32 [#allocation5], 4
      %s37 = int_to_ptr.vmem [resolvable:$true] %s36
      %39 = dma.hbm_to_vmem [thread:$0]  %s35, 32, %s37, [#allocation6]
    $region9: #{tpu_custom_call.1} parent=1 // pred_fallthru
      _
    // Predicated region
    $region10: #{tpu_custom_call.1} parent=1 // pred_check
      _
    $region11: #{tpu_custom_call.1} parent=1 // pred_check_branch
      %41 = sbr.rel (0) target = $region13
    $region12: #{tpu_custom_call.1} parent=1 // pred_region
      %43 = vsyncadd [#allocation6], 0
      %s44 = sshll.u32 %s2, 4
      %s45 = int_to_ptr.hbm [resolvable:$true] %s44
      %s46 = sshll.u32 [#allocation7], 4
      %s47 = int_to_ptr.vmem [resolvable:$true] %s46
      %52 = dma.hbm_to_vmem [thread:$0]  %s45, 512, %s47, [#allocation6], 128, 128, 8
    $region13: #{tpu_custom_call.1} parent=1 // pred_fallthru
      _
    // Predicated region
    $region14: #{tpu_custom_call.1} parent=1 // pred_check
      _
    $region15: #{tpu_custom_call.1} parent=1 // pred_check_branch
      %54 = sbr.rel (0) target = $region17
    $region16: #{tpu_custom_call.1} parent=1 // pred_region
      %56 = vsyncadd [#allocation9], 0
      %s57 = sshll.u32 %s3, 4
      %s58 = int_to_ptr.hbm [resolvable:$true] %s57
      %s59 = sshll.u32 [#allocation8], 4
      %s60 = int_to_ptr.vmem [resolvable:$true] %s59
      %65 = dma.hbm_to_vmem [thread:$0]  %s58, 512, %s60, [#allocation9], 128, 128, 8
    $region17: #{tpu_custom_call.1} parent=1 // pred_fallthru
      _
    // Predicated region
    $region18: #{tpu_custom_call.1} parent=1 // pred_check
      _
    $region19: #{tpu_custom_call.1} parent=1 // pred_check_branch
      %67 = sbr.rel (0) target = $region21
    $region20: #{tpu_custom_call.1} parent=1 // pred_region
      %69 = vsyncadd [#allocation9], 0
      %s70 = sshll.u32 %s4, 4
      %s71 = int_to_ptr.hbm [resolvable:$true] %s70
      %s72 = sshll.u32 [#allocation10], 4
      %s73 = int_to_ptr.vmem [resolvable:$true] %s72
      %78 = dma.hbm_to_vmem [thread:$0]  %s71, 512, %s73, [#allocation9], 128, 128, 8
    $region21: #{tpu_custom_call.1} parent=1 // pred_fallthru
      _
    // Predicated region
    $region22: #{tpu_custom_call.1} parent=1 // pred_check
      _
    $region23: #{tpu_custom_call.1} parent=1 // pred_check_branch
      %80 = sbr.rel (0) target = $region25
    $region24: #{tpu_custom_call.1} parent=1 // pred_region
      _
    $region25: #{tpu_custom_call.1} parent=1 // pred_fallthru
      _
    // Predicated region
    $region26: #{tpu_custom_call.1} parent=1 // pred_check
      _
    $region27: #{tpu_custom_call.1} parent=1 // pred_check_branch
      %82 = sbr.rel (0) target = $region29
    $region28: #{tpu_custom_call.1} parent=1 // pred_region
      _
    $region29: #{tpu_custom_call.1} parent=1 // pred_fallthru
      _
    // Predicated region
    $region30: #{tpu_custom_call.1} parent=1 // pred_check
      _
    $region31: #{tpu_custom_call.1} parent=1 // pred_check_branch
      %84 = sbr.rel (0) target = $region33
    $region32: #{tpu_custom_call.1} parent=1 // pred_region
      %86 = dma.done [#allocation3], 256
    $region33: #{tpu_custom_call.1} parent=1 // pred_fallthru
      _
    // Predicated region
    $region34: #{tpu_custom_call.1} parent=1 // pred_check
      _
    $region35: #{tpu_custom_call.1} parent=1 // pred_check_branch
      %88 = sbr.rel (0) target = $region37
    $region36: #{tpu_custom_call.1} parent=1 // pred_region
      %90 = dma.done [#allocation6], 32
    $region37: #{tpu_custom_call.1} parent=1 // pred_fallthru
      _
    // Predicated region
    $region38: #{tpu_custom_call.1} parent=1 // pred_check
      _
    $region39: #{tpu_custom_call.1} parent=1 // pred_check_branch
      %92 = sbr.rel (0) target = $region41
    $region40: #{tpu_custom_call.1} parent=1 // pred_region
      %94 = dma.done [#allocation6], 512
    $region41: #{tpu_custom_call.1} parent=1 // pred_fallthru
      _
    // Predicated region
    $region42: #{tpu_custom_call.1} parent=1 // pred_check
      _
    $region43: #{tpu_custom_call.1} parent=1 // pred_check_branch
      %96 = sbr.rel (0) target = $region45
    $region44: #{tpu_custom_call.1} parent=1 // pred_region
      %98 = dma.done [#allocation9], 512
    $region45: #{tpu_custom_call.1} parent=1 // pred_fallthru
      _
    // Predicated region
    $region46: #{tpu_custom_call.1} parent=1 // pred_check
      _
    $region47: #{tpu_custom_call.1} parent=1 // pred_check_branch
      %100 = sbr.rel (0) target = $region49
    $region48: #{tpu_custom_call.1} parent=1 // pred_region
      %102 = dma.done [#allocation9], 512
    $region49: #{tpu_custom_call.1} parent=1 // pred_fallthru
      _
    %v103 = vld [vmem:[#allocation7] sm:$0xff]
    %v104 = vld [vmem:[#allocation7 + $0x8] sm:$0xff]
    %v105 = vld [vmem:[#allocation7 + $0x10] sm:$0xff]
    %v106 = vld [vmem:[#allocation7 + $0x18] sm:$0xff]
    %v107 = vld [vmem:[#allocation8] sm:$0xff]
    %v108 = vld [vmem:[#allocation8 + $0x8] sm:$0xff]
    %v109 = vld [vmem:[#allocation8 + $0x10] sm:$0xff]
    %v110 = vld [vmem:[#allocation8 + $0x18] sm:$0xff]
    %v111 = vld [vmem:[#allocation10] sm:$0xff]
    %v112 = vld [vmem:[#allocation10 + $0x8] sm:$0xff]
    %v113 = vld [vmem:[#allocation10 + $0x10] sm:$0xff]
    %v114 = vld [vmem:[#allocation10 + $0x18] sm:$0xff]
    %v115 = vld [vmem:[%s5] sm:$0x1]
    %v117 = vperm.slane %v115, 0
    %v119 = vld [vmem:[%s6] sm:$0x1]
    %v120 = vperm.slane %v119, 0
    %v121 = vld [vmem:[%s6 + $0x1] sm:$0x1]
    %v122 = vperm.slane %v121, 0
    %v123 = vld [vmem:[#allocation2] sm:$0x3]
    %v124 = vmul.f32 %v123, 0.5
    %v125 = vtanh.pop %v124
    %v126 = vadd.f32 %v125, 1.0
    %v127 = vmul.f32 %v126, 0.5
    %v128 = vmul.f32 %v127, %v120
    %130 = vrot.lane.b32.xlu0 %v128, 64
    %v131 = vpop.permute.xlu0 %130
    %v133 = vadd.f32 %v123, %v131
    %v134 = vtanh.pop %v133
    %v135 = vsub.f32 1.0, %v127
    %137 = vrot.lane.b32.xlu0 %v134, 96
    %v138 = vpop.permute.xlu0 %137
    %v140 = vmul.f32 %v135, %v138
    %142 = vrot.lane.b32.xlu0 %v140, 96
    %v143 = vpop.permute.xlu0 %142
    %vm144 = vcmask 261120
    %v145 = vsel %vm144, %v143, 0
    %147 = vmatpush.msra.mxu0 0.0
    %148 = vmatpush.msra.mxu0 0.0
    %149 = vmatpush.msra.mxu0 0.0
    %150 = vmatpush.msra.mxu0 0.0
    %151 = vmatpush.msra.mxu0 0.0
    %152 = vmatpush.msra.mxu0 0.0
    %153 = vmatpush.msra.mxu0 0.0
    %154 = vmatpush.msra.mxu0 0.0
    %155 = vmatpush.msra.mxu0 0.0
    %156 = vmatpush.msra.mxu0 0.0
    %157 = vmatpush.msra.mxu0 0.0
    %158 = vmatpush.msra.mxu0 0.0
    %159 = vmatpush.msra.mxu0 %v106
    %160 = vmatpush.msra.mxu0 %v105
    %161 = vmatpush.msra.mxu0 %v104
    %162 = vmatpush.msra.mxu0 %v103
    %163 = vmatmul.f32.gmra.mxu0 %v145
    %v164 = vpop.f32.mrf.mxu0
    %v165 = vadd.f32 0.0, %v164
    %166 = vdwg.mxu0
    %s167 = scalar_lea.vmem [#allocation2], 2
    %v168 = vld [vmem:[%s167] sm:$0x3]
    %v169 = vadd.f32 %v168, %v165
    %v170 = vmul.f32 %v169, 0.5
    %v171 = vtanh.pop %v170
    %v172 = vadd.f32 %v171, 1.0
    %v173 = vmul.f32 %v172, 0.5
    %175 = vrot.lane.b32.xlu0 %v120, 64
    %v176 = vpop.permute.xlu0 %175
    %v178 = vadd.f32 %v165, %v176
    %180 = vrot.lane.b32.xlu0 %v178, 64
    %v181 = vpop.permute.xlu0 %180
    %v183 = vmul.f32 %v173, %v181
    %185 = vrot.lane.b32.xlu0 %v183, 64
    %v186 = vpop.permute.xlu0 %185
    %v188 = vadd.f32 %v168, %v186
    %v189 = vtanh.pop %v188
    %v190 = vsub.f32 1.0, %v173
    %192 = vrot.lane.b32.xlu0 %v189, 96
    %v193 = vpop.permute.xlu0 %192
    %v195 = vmul.f32 %v190, %v193
    %v196 = vmul.f32 %v173, %v140
    %v197 = vadd.f32 %v195, %v196
    %199 = vrot.lane.b32.xlu0 %v197, 96
    %v200 = vpop.permute.xlu0 %199
    %v201 = vsel %vm144, %v200, 0
    %203 = vmatpush.msra.mxu0 0.0
    %204 = vmatpush.msra.mxu0 0.0
    %205 = vmatpush.msra.mxu0 0.0
    %206 = vmatpush.msra.mxu0 0.0
    %207 = vmatpush.msra.mxu0 0.0
    %208 = vmatpush.msra.mxu0 0.0
    %209 = vmatpush.msra.mxu0 0.0
    %210 = vmatpush.msra.mxu0 0.0
    %211 = vmatpush.msra.mxu0 0.0
    %212 = vmatpush.msra.mxu0 0.0
    %213 = vmatpush.msra.mxu0 0.0
    %214 = vmatpush.msra.mxu0 0.0
    %215 = vmatpush.msra.mxu0 %v106
    %216 = vmatpush.msra.mxu0 %v105
    %217 = vmatpush.msra.mxu0 %v104
    %218 = vmatpush.msra.mxu0 %v103
    %219 = vmatmul.f32.gmra.mxu0 %v201
    %v220 = vpop.f32.mrf.mxu0
    %v221 = vadd.f32 0.0, %v220
    %222 = vdwg.mxu0
    %s223 = scalar_lea.vmem [#allocation2], 4
    %v224 = vld [vmem:[%s223] sm:$0x3]
    %v225 = vadd.f32 %v224, %v221
    %v226 = vmul.f32 %v225, 0.5
    %v227 = vtanh.pop %v226
    %v228 = vadd.f32 %v227, 1.0
    %v229 = vmul.f32 %v228, 0.5
    %v230 = vadd.f32 %v221, %v176
    %232 = vrot.lane.b32.xlu0 %v230, 64
    %v233 = vpop.permute.xlu0 %232
    %v235 = vmul.f32 %v229, %v233
    %237 = vrot.lane.b32.xlu0 %v235, 64
    %v238 = vpop.permute.xlu0 %237
    %v240 = vadd.f32 %v224, %v238
    %v241 = vtanh.pop %v240
    %v242 = vsub.f32 1.0, %v229
    %244 = vrot.lane.b32.xlu0 %v241, 96
    %v245 = vpop.permute.xlu0 %244
    %v247 = vmul.f32 %v242, %v245
    %v248 = vmul.f32 %v229, %v197
    %v249 = vadd.f32 %v247, %v248
    %251 = vrot.lane.b32.xlu0 %v249, 96
    %v252 = vpop.permute.xlu0 %251
    %v253 = vsel %vm144, %v252, 0
    %255 = vmatpush.msra.mxu0 0.0
    %256 = vmatpush.msra.mxu0 0.0
    %257 = vmatpush.msra.mxu0 0.0
    %258 = vmatpush.msra.mxu0 0.0
    %259 = vmatpush.msra.mxu0 0.0
    %260 = vmatpush.msra.mxu0 0.0
    %261 = vmatpush.msra.mxu0 0.0
    %262 = vmatpush.msra.mxu0 0.0
    %263 = vmatpush.msra.mxu0 0.0
    %264 = vmatpush.msra.mxu0 0.0
    %265 = vmatpush.msra.mxu0 0.0
    %266 = vmatpush.msra.mxu0 0.0
    %267 = vmatpush.msra.mxu0 %v106
    %268 = vmatpush.msra.mxu0 %v105
    %269 = vmatpush.msra.mxu0 %v104
    %270 = vmatpush.msra.mxu0 %v103
    %271 = vmatmul.f32.gmra.mxu0 %v253
    %v272 = vpop.f32.mrf.mxu0
    %v273 = vadd.f32 0.0, %v272
    %274 = vdwg.mxu0
    %s275 = scalar_lea.vmem [#allocation2], 6
    %v276 = vld [vmem:[%s275] sm:$0x3]
    %v277 = vadd.f32 %v276, %v273
    %v278 = vmul.f32 %v277, 0.5
    %v279 = vtanh.pop %v278
    %v280 = vadd.f32 %v279, 1.0
    %v281 = vmul.f32 %v280, 0.5
    %v282 = vadd.f32 %v273, %v176
    %284 = vrot.lane.b32.xlu0 %v282, 64
    %v285 = vpop.permute.xlu0 %284
    %v287 = vmul.f32 %v281, %v285
    %289 = vrot.lane.b32.xlu0 %v287, 64
    %v290 = vpop.permute.xlu0 %289
    %v292 = vadd.f32 %v276, %v290
    %v293 = vtanh.pop %v292
    %v294 = vsub.f32 1.0, %v281
    %296 = vrot.lane.b32.xlu0 %v293, 96
    %v297 = vpop.permute.xlu0 %296
    %v299 = vmul.f32 %v294, %v297
    %v300 = vmul.f32 %v281, %v249
    %v301 = vadd.f32 %v299, %v300
    %303 = vrot.lane.b32.xlu0 %v301, 96
    %v304 = vpop.permute.xlu0 %303
    %v305 = vsel %vm144, %v304, 0
    %307 = vmatpush.msra.mxu0 0.0
    %308 = vmatpush.msra.mxu0 0.0
    %309 = vmatpush.msra.mxu0 0.0
    %310 = vmatpush.msra.mxu0 0.0
    %311 = vmatpush.msra.mxu0 0.0
    %312 = vmatpush.msra.mxu0 0.0
    %313 = vmatpush.msra.mxu0 0.0
    %314 = vmatpush.msra.mxu0 0.0
    %315 = vmatpush.msra.mxu0 0.0
    %316 = vmatpush.msra.mxu0 0.0
    %317 = vmatpush.msra.mxu0 0.0
    %318 = vmatpush.msra.mxu0 0.0
    %319 = vmatpush.msra.mxu0 %v106
    %320 = vmatpush.msra.mxu0 %v105
    %321 = vmatpush.msra.mxu0 %v104
    %322 = vmatpush.msra.mxu0 %v103
    %323 = vmatmul.f32.gmra.mxu0 %v305
    %v324 = vpop.f32.mrf.mxu0
    %v325 = vadd.f32 0.0, %v324
    %326 = vdwg.mxu0
    %s327 = scalar_lea.vmem [#allocation2], 8
    %v328 = vld [vmem:[%s327] sm:$0x3]
    %v329 = vadd.f32 %v328, %v325
    %v330 = vmul.f32 %v329, 0.5
    %v331 = vtanh.pop %v330
    %v332 = vadd.f32 %v331, 1.0
    %v333 = vmul.f32 %v332, 0.5
    %v334 = vadd.f32 %v325, %v176
    %336 = vrot.lane.b32.xlu0 %v334, 64
    %v337 = vpop.permute.xlu0 %336
    %v339 = vmul.f32 %v333, %v337
    %341 = vrot.lane.b32.xlu0 %v339, 64
    %v342 = vpop.permute.xlu0 %341
    %v344 = vadd.f32 %v328, %v342
    %v345 = vtanh.pop %v344
    %v346 = vsub.f32 1.0, %v333
    %348 = vrot.lane.b32.xlu0 %v345, 96
    %v349 = vpop.permute.xlu0 %348
    %v351 = vmul.f32 %v346, %v349
    %v352 = vmul.f32 %v333, %v301
    %v353 = vadd.f32 %v351, %v352
    %355 = vrot.lane.b32.xlu0 %v353, 96
    %v356 = vpop.permute.xlu0 %355
    %v357 = vsel %vm144, %v356, 0
    %359 = vmatpush.msra.mxu0 0.0
    %360 = vmatpush.msra.mxu0 0.0
    %361 = vmatpush.msra.mxu0 0.0
    %362 = vmatpush.msra.mxu0 0.0
    %363 = vmatpush.msra.mxu0 0.0
    %364 = vmatpush.msra.mxu0 0.0
    %365 = vmatpush.msra.mxu0 0.0
    %366 = vmatpush.msra.mxu0 0.0
    %367 = vmatpush.msra.mxu0 0.0
    %368 = vmatpush.msra.mxu0 0.0
    %369 = vmatpush.msra.mxu0 0.0
    %370 = vmatpush.msra.mxu0 0.0
    %371 = vmatpush.msra.mxu0 %v106
    %372 = vmatpush.msra.mxu0 %v105
    %373 = vmatpush.msra.mxu0 %v104
    %374 = vmatpush.msra.mxu0 %v103
    %375 = vmatmul.f32.gmra.mxu0 %v357
    %v376 = vpop.f32.mrf.mxu0
    %v377 = vadd.f32 0.0, %v376
    %378 = vdwg.mxu0
    %s379 = scalar_lea.vmem [#allocation2], 10
    %v380 = vld [vmem:[%s379] sm:$0x3]
    %v381 = vadd.f32 %v380, %v377
    %v382 = vmul.f32 %v381, 0.5
    %v383 = vtanh.pop %v382
    %v384 = vadd.f32 %v383, 1.0
    %v385 = vmul.f32 %v384, 0.5
    %v386 = vadd.f32 %v377, %v176
    %388 = vrot.lane.b32.xlu0 %v386, 64
    %v389 = vpop.permute.xlu0 %388
    %v391 = vmul.f32 %v385, %v389
    %393 = vrot.lane.b32.xlu0 %v391, 64
    %v394 = vpop.permute.xlu0 %393
    %v396 = vadd.f32 %v380, %v394
    %v397 = vtanh.pop %v396
    %v398 = vsub.f32 1.0, %v385
    %400 = vrot.lane.b32.xlu0 %v397, 96
    %v401 = vpop.permute.xlu0 %400
    %v403 = vmul.f32 %v398, %v401
    %v404 = vmul.f32 %v385, %v353
    %v405 = vadd.f32 %v403, %v404
    %407 = vrot.lane.b32.xlu0 %v405, 96
    %v408 = vpop.permute.xlu0 %407
    %v409 = vsel %vm144, %v408, 0
    %411 = vmatpush.msra.mxu0 0.0
    %412 = vmatpush.msra.mxu0 0.0
    %413 = vmatpush.msra.mxu0 0.0
    %414 = vmatpush.msra.mxu0 0.0
    %415 = vmatpush.msra.mxu0 0.0
    %416 = vmatpush.msra.mxu0 0.0
    %417 = vmatpush.msra.mxu0 0.0
    %418 = vmatpush.msra.mxu0 0.0
    %419 = vmatpush.msra.mxu0 0.0
    %420 = vmatpush.msra.mxu0 0.0
    %421 = vmatpush.msra.mxu0 0.0
    %422 = vmatpush.msra.mxu0 0.0
    %423 = vmatpush.msra.mxu0 %v106
    %424 = vmatpush.msra.mxu0 %v105
    %425 = vmatpush.msra.mxu0 %v104
    %426 = vmatpush.msra.mxu0 %v103
    %427 = vmatmul.f32.gmra.mxu0 %v409
    %v428 = vpop.f32.mrf.mxu0
    %v429 = vadd.f32 0.0, %v428
    %430 = vdwg.mxu0
    %s431 = scalar_lea.vmem [#allocation2], 12
    %v432 = vld [vmem:[%s431] sm:$0x3]
    %v433 = vadd.f32 %v432, %v429
    %v434 = vmul.f32 %v433, 0.5
    %v435 = vtanh.pop %v434
    %v436 = vadd.f32 %v435, 1.0
    %v437 = vmul.f32 %v436, 0.5
    %v438 = vadd.f32 %v429, %v176
    %440 = vrot.lane.b32.xlu0 %v438, 64
    %v441 = vpop.permute.xlu0 %440
    %v443 = vmul.f32 %v437, %v441
    %445 = vrot.lane.b32.xlu0 %v443, 64
    %v446 = vpop.permute.xlu0 %445
    %v448 = vadd.f32 %v432, %v446
    %v449 = vtanh.pop %v448
    %v450 = vsub.f32 1.0, %v437
    %452 = vrot.lane.b32.xlu0 %v449, 96
    %v453 = vpop.permute.xlu0 %452
    %v455 = vmul.f32 %v450, %v453
    %v456 = vmul.f32 %v437, %v405
    %v457 = vadd.f32 %v455, %v456
    %459 = vrot.lane.b32.xlu0 %v457, 96
    %v460 = vpop.permute.xlu0 %459
    %v461 = vsel %vm144, %v460, 0
    %463 = vmatpush.msra.mxu0 0.0
    %464 = vmatpush.msra.mxu0 0.0
    %465 = vmatpush.msra.mxu0 0.0
    %466 = vmatpush.msra.mxu0 0.0
    %467 = vmatpush.msra.mxu0 0.0
    %468 = vmatpush.msra.mxu0 0.0
    %469 = vmatpush.msra.mxu0 0.0
    %470 = vmatpush.msra.mxu0 0.0
    %471 = vmatpush.msra.mxu0 0.0
    %472 = vmatpush.msra.mxu0 0.0
    %473 = vmatpush.msra.mxu0 0.0
    %474 = vmatpush.msra.mxu0 0.0
    %475 = vmatpush.msra.mxu0 %v106
    %476 = vmatpush.msra.mxu0 %v105
    %477 = vmatpush.msra.mxu0 %v104
    %478 = vmatpush.msra.mxu0 %v103
    %479 = vmatmul.f32.gmra.mxu0 %v461
    %v480 = vpop.f32.mrf.mxu0
    %v481 = vadd.f32 0.0, %v480
    %482 = vdwg.mxu0
    %s483 = scalar_lea.vmem [#allocation2], 14
    %v484 = vld [vmem:[%s483] sm:$0x3]
    %v485 = vadd.f32 %v484, %v481
    %v486 = vmul.f32 %v485, 0.5
    %v487 = vtanh.pop %v486
    %v488 = vadd.f32 %v487, 1.0
    %v489 = vmul.f32 %v488, 0.5
    %v490 = vadd.f32 %v481, %v176
    %492 = vrot.lane.b32.xlu0 %v490, 64
    %v493 = vpop.permute.xlu0 %492
    %v495 = vmul.f32 %v489, %v493
    %497 = vrot.lane.b32.xlu0 %v495, 64
    %v498 = vpop.permute.xlu0 %497
    %v500 = vadd.f32 %v484, %v498
    %v501 = vtanh.pop %v500
    %v502 = vsub.f32 1.0, %v489
    %504 = vrot.lane.b32.xlu0 %v501, 96
    %v505 = vpop.permute.xlu0 %504
    %v507 = vmul.f32 %v502, %v505
    %v508 = vmul.f32 %v489, %v457
    %v509 = vadd.f32 %v507, %v508
    %v510 = vld [vmem:[#allocation5] sm:$0x3]
    %512 = vrot.lane.b32.xlu0 %v509, 96
    %v513 = vpop.permute.xlu0 %512
    %v514 = vsel %vm144, %v513, 0
    %516 = vmatpush.msra.mxu0 0.0
    %517 = vmatpush.msra.mxu0 0.0
    %518 = vmatpush.msra.mxu0 0.0
    %519 = vmatpush.msra.mxu0 0.0
    %520 = vmatpush.msra.mxu0 0.0
    %521 = vmatpush.msra.mxu0 0.0
    %522 = vmatpush.msra.mxu0 0.0
    %523 = vmatpush.msra.mxu0 0.0
    %524 = vmatpush.msra.mxu0 0.0
    %525 = vmatpush.msra.mxu0 0.0
    %526 = vmatpush.msra.mxu0 0.0
    %527 = vmatpush.msra.mxu0 0.0
    %528 = vmatpush.msra.mxu0 %v110
    %529 = vmatpush.msra.mxu0 %v109
    %530 = vmatpush.msra.mxu0 %v108
    %531 = vmatpush.msra.mxu0 %v107
    %532 = vmatmul.f32.gmra.mxu0 %v514
    %v533 = vpop.f32.mrf.mxu0
    %v534 = vadd.f32 0.0, %v533
    %535 = vdwg.mxu0
    %v536 = vadd.f32 %v510, %v534
    %v537 = vmul.f32 %v536, 0.5
    %v538 = vtanh.pop %v537
    %v539 = vadd.f32 %v538, 1.0
    %v540 = vmul.f32 %v539, 0.5
    %542 = vrot.lane.b32.xlu0 %v122, 64
    %v543 = vpop.permute.xlu0 %542
    %v545 = vadd.f32 %v534, %v543
    %547 = vrot.lane.b32.xlu0 %v545, 64
    %v548 = vpop.permute.xlu0 %547
    %v550 = vmul.f32 %v540, %v548
    %552 = vrot.lane.b32.xlu0 %v550, 64
    %v553 = vpop.permute.xlu0 %552
    %v555 = vadd.f32 %v510, %v553
    %v556 = vtanh.pop %v555
    %v557 = vsub.f32 1.0, %v540
    %559 = vrot.lane.b32.xlu0 %v556, 96
    %v560 = vpop.permute.xlu0 %559
    %v562 = vmul.f32 %v557, %v560
    %v563 = vmul.f32 %v540, %v509
    %v564 = vadd.f32 %v562, %v563
    %566 = vrot.lane.b32.xlu0 %v564, 96
    %v567 = vpop.permute.xlu0 %566
    %v568 = vsel %vm144, %v567, 0
    %570 = vmatpush.msra.mxu0 0.0
    %571 = vmatpush.msra.mxu0 0.0
    %572 = vmatpush.msra.mxu0 0.0
    %573 = vmatpush.msra.mxu0 0.0
    %574 = vmatpush.msra.mxu0 0.0
    %575 = vmatpush.msra.mxu0 0.0
    %576 = vmatpush.msra.mxu0 0.0
    %577 = vmatpush.msra.mxu0 0.0
    %578 = vmatpush.msra.mxu0 0.0
    %579 = vmatpush.msra.mxu0 0.0
    %580 = vmatpush.msra.mxu0 0.0
    %581 = vmatpush.msra.mxu0 0.0
    %582 = vmatpush.msra.mxu0 %v114
    %583 = vmatpush.msra.mxu0 %v113
    %584 = vmatpush.msra.mxu0 %v112
    %585 = vmatpush.msra.mxu0 %v111
    %586 = vmatmul.f32.gmra.mxu0 %v568
    %v587 = vpop.f32.mrf.mxu0
    %v588 = vadd.f32 %v117, %v587
    %589 = vdwg.mxu0
    %591 = vrot.lane.b32.xlu0 %v588, 32
    %v592 = vpop.permute.xlu0 %591
    %vm594 = vcmask 25600
    %595 = vst.msk [vmem:[#allocation11] sm:$0x3] %vm594, %v592
    %596 = vmatpush.msra.mxu0 0.0
    %597 = vmatpush.msra.mxu0 0.0
    %598 = vmatpush.msra.mxu0 0.0
    %599 = vmatpush.msra.mxu0 0.0
    %600 = vmatpush.msra.mxu0 0.0
    %601 = vmatpush.msra.mxu0 0.0
    %602 = vmatpush.msra.mxu0 0.0
    %603 = vmatpush.msra.mxu0 0.0
    %604 = vmatpush.msra.mxu0 0.0
    %605 = vmatpush.msra.mxu0 0.0
    %606 = vmatpush.msra.mxu0 0.0
    %607 = vmatpush.msra.mxu0 0.0
    %608 = vmatpush.msra.mxu0 %v110
    %609 = vmatpush.msra.mxu0 %v109
    %610 = vmatpush.msra.mxu0 %v108
    %611 = vmatpush.msra.mxu0 %v107
    %612 = vmatmul.f32.gmra.mxu0 %v568
    %v613 = vpop.f32.mrf.mxu0
    %v614 = vadd.f32 0.0, %v613
    %615 = vdwg.mxu0
    %v616 = vadd.f32 %v588, %v614
    %v617 = vmul.f32 %v616, 0.5
    %v618 = vtanh.pop %v617
    %v619 = vadd.f32 %v618, 1.0
    %v620 = vmul.f32 %v619, 0.5
    %v621 = vadd.f32 %v614, %v543
    %623 = vrot.lane.b32.xlu0 %v621, 64
    %v624 = vpop.permute.xlu0 %623
    %v626 = vmul.f32 %v620, %v624
    %628 = vrot.lane.b32.xlu0 %v626, 64
    %v629 = vpop.permute.xlu0 %628
    %v631 = vadd.f32 %v588, %v629
    %v632 = vtanh.pop %v631
    %v633 = vsub.f32 1.0, %v620
    %635 = vrot.lane.b32.xlu0 %v632, 96
    %v636 = vpop.permute.xlu0 %635
    %v638 = vmul.f32 %v633, %v636
    %v639 = vmul.f32 %v620, %v564
    %v640 = vadd.f32 %v638, %v639
    %642 = vrot.lane.b32.xlu0 %v640, 96
    %v643 = vpop.permute.xlu0 %642
    %v644 = vsel %vm144, %v643, 0
    %646 = vmatpush.msra.mxu0 0.0
    %647 = vmatpush.msra.mxu0 0.0
    %648 = vmatpush.msra.mxu0 0.0
    %649 = vmatpush.msra.mxu0 0.0
    %650 = vmatpush.msra.mxu0 0.0
    %651 = vmatpush.msra.mxu0 0.0
    %652 = vmatpush.msra.mxu0 0.0
    %653 = vmatpush.msra.mxu0 0.0
    %654 = vmatpush.msra.mxu0 0.0
    %655 = vmatpush.msra.mxu0 0.0
    %656 = vmatpush.msra.mxu0 0.0
    %657 = vmatpush.msra.mxu0 0.0
    %658 = vmatpush.msra.mxu0 %v114
    %659 = vmatpush.msra.mxu0 %v113
    %660 = vmatpush.msra.mxu0 %v112
    %661 = vmatpush.msra.mxu0 %v111
    %662 = vmatmul.f32.gmra.mxu0 %v644
    %v663 = vpop.f32.mrf.mxu0
    %v664 = vadd.f32 %v117, %v663
    %665 = vdwg.mxu0
    %667 = vrot.lane.b32.xlu0 %v664, 36
    %v668 = vpop.permute.xlu0 %667
    %vm670 = vcmask 58400
    %671 = vst.msk [vmem:[#allocation11] sm:$0x3] %vm670, %v668
    %672 = vmatpush.msra.mxu0 0.0
    %673 = vmatpush.msra.mxu0 0.0
    %674 = vmatpush.msra.mxu0 0.0
    %675 = vmatpush.msra.mxu0 0.0
    %676 = vmatpush.msra.mxu0 0.0
    %677 = vmatpush.msra.mxu0 0.0
    %678 = vmatpush.msra.mxu0 0.0
    %679 = vmatpush.msra.mxu0 0.0
    %680 = vmatpush.msra.mxu0 0.0
    %681 = vmatpush.msra.mxu0 0.0
    %682 = vmatpush.msra.mxu0 0.0
    %683 = vmatpush.msra.mxu0 0.0
    %684 = vmatpush.msra.mxu0 %v110
    %685 = vmatpush.msra.mxu0 %v109
    %686 = vmatpush.msra.mxu0 %v108
    %687 = vmatpush.msra.mxu0 %v107
    %688 = vmatmul.f32.gmra.mxu0 %v644
    %v689 = vpop.f32.mrf.mxu0
    %v690 = vadd.f32 0.0, %v689
    %691 = vdwg.mxu0
    %v692 = vadd.f32 %v664, %v690
    %v693 = vmul.f32 %v692, 0.5
    %v694 = vtanh.pop %v693
    %v695 = vadd.f32 %v694, 1.0
    %v696 = vmul.f32 %v695, 0.5
    %v697 = vadd.f32 %v690, %v543
    %699 = vrot.lane.b32.xlu0 %v697, 64
    %v700 = vpop.permute.xlu0 %699
    %v702 = vmul.f32 %v696, %v700
    %704 = vrot.lane.b32.xlu0 %v702, 64
    %v705 = vpop.permute.xlu0 %704
    %v707 = vadd.f32 %v664, %v705
    %v708 = vtanh.pop %v707
    %v709 = vsub.f32 1.0, %v696
    %711 = vrot.lane.b32.xlu0 %v708, 96
    %v712 = vpop.permute.xlu0 %711
    %v714 = vmul.f32 %v709, %v712
    %v715 = vmul.f32 %v696, %v640
    %v716 = vadd.f32 %v714, %v715
    %718 = vrot.lane.b32.xlu0 %v716, 96
    %v719 = vpop.permute.xlu0 %718
    %v720 = vsel %vm144, %v719, 0
    %722 = vmatpush.msra.mxu0 0.0
    %723 = vmatpush.msra.mxu0 0.0
    %724 = vmatpush.msra.mxu0 0.0
    %725 = vmatpush.msra.mxu0 0.0
    %726 = vmatpush.msra.mxu0 0.0
    %727 = vmatpush.msra.mxu0 0.0
    %728 = vmatpush.msra.mxu0 0.0
    %729 = vmatpush.msra.mxu0 0.0
    %730 = vmatpush.msra.mxu0 0.0
    %731 = vmatpush.msra.mxu0 0.0
    %732 = vmatpush.msra.mxu0 0.0
    %733 = vmatpush.msra.mxu0 0.0
    %734 = vmatpush.msra.mxu0 %v114
    %735 = vmatpush.msra.mxu0 %v113
    %736 = vmatpush.msra.mxu0 %v112
    %737 = vmatpush.msra.mxu0 %v111
    %738 = vmatmul.f32.gmra.mxu0 %v720
    %v739 = vpop.f32.mrf.mxu0
    %v740 = vadd.f32 %v117, %v739
    %741 = vdwg.mxu0
    %743 = vrot.lane.b32.xlu0 %v740, 40
    %v744 = vpop.permute.xlu0 %743
    %vm746 = vcmask 91200
    %747 = vst.msk [vmem:[#allocation11] sm:$0x3] %vm746, %v744
    %748 = vmatpush.msra.mxu0 0.0
    %749 = vmatpush.msra.mxu0 0.0
    %750 = vmatpush.msra.mxu0 0.0
    %751 = vmatpush.msra.mxu0 0.0
    %752 = vmatpush.msra.mxu0 0.0
    %753 = vmatpush.msra.mxu0 0.0
    %754 = vmatpush.msra.mxu0 0.0
    %755 = vmatpush.msra.mxu0 0.0
    %756 = vmatpush.msra.mxu0 0.0
    %757 = vmatpush.msra.mxu0 0.0
    %758 = vmatpush.msra.mxu0 0.0
    %759 = vmatpush.msra.mxu0 0.0
    %760 = vmatpush.msra.mxu0 %v110
    %761 = vmatpush.msra.mxu0 %v109
    %762 = vmatpush.msra.mxu0 %v108
    %763 = vmatpush.msra.mxu0 %v107
    %764 = vmatmul.f32.gmra.mxu0 %v720
    %v765 = vpop.f32.mrf.mxu0
    %v766 = vadd.f32 0.0, %v765
    %767 = vdwg.mxu0
    %v768 = vadd.f32 %v740, %v766
    %v769 = vmul.f32 %v768, 0.5
    %v770 = vtanh.pop %v769
    %v771 = vadd.f32 %v770, 1.0
    %v772 = vmul.f32 %v771, 0.5
    %v773 = vadd.f32 %v766, %v543
    %775 = vrot.lane.b32.xlu0 %v773, 64
    %v776 = vpop.permute.xlu0 %775
    %v778 = vmul.f32 %v772, %v776
    %780 = vrot.lane.b32.xlu0 %v778, 64
    %v781 = vpop.permute.xlu0 %780
    %v783 = vadd.f32 %v740, %v781
    %v784 = vtanh.pop %v783
    %v785 = vsub.f32 1.0, %v772
    %787 = vrot.lane.b32.xlu0 %v784, 96
    %v788 = vpop.permute.xlu0 %787
    %v790 = vmul.f32 %v785, %v788
    %v791 = vmul.f32 %v772, %v716
    %v792 = vadd.f32 %v790, %v791
    %794 = vrot.lane.b32.xlu0 %v792, 96
    %v795 = vpop.permute.xlu0 %794
    %v796 = vsel %vm144, %v795, 0
    %798 = vmatpush.msra.mxu0 0.0
    %799 = vmatpush.msra.mxu0 0.0
    %800 = vmatpush.msra.mxu0 0.0
    %801 = vmatpush.msra.mxu0 0.0
    %802 = vmatpush.msra.mxu0 0.0
    %803 = vmatpush.msra.mxu0 0.0
    %804 = vmatpush.msra.mxu0 0.0
    %805 = vmatpush.msra.mxu0 0.0
    %806 = vmatpush.msra.mxu0 0.0
    %807 = vmatpush.msra.mxu0 0.0
    %808 = vmatpush.msra.mxu0 0.0
    %809 = vmatpush.msra.mxu0 0.0
    %810 = vmatpush.msra.mxu0 %v114
    %811 = vmatpush.msra.mxu0 %v113
    %812 = vmatpush.msra.mxu0 %v112
    %813 = vmatpush.msra.mxu0 %v111
    %814 = vmatmul.f32.gmra.mxu0 %v796
    %v815 = vpop.f32.mrf.mxu0
    %v816 = vadd.f32 %v117, %v815
    %817 = vdwg.mxu0
    %819 = vrot.lane.b32.xlu0 %v816, 44
    %v820 = vpop.permute.xlu0 %819
    %vm822 = vcmask 124000
    %823 = vst.msk [vmem:[#allocation11] sm:$0x3] %vm822, %v820
    // Predicated region
    $region50: #{tpu_custom_call.1} parent=1 // pred_check
      _
    $region51: #{tpu_custom_call.1} parent=1 // pred_check_branch
      %825 = sbr.rel (0) target = $region53
    $region52: #{tpu_custom_call.1} parent=1 // pred_region
      %827 = vsyncadd [#allocation4], 0
      %s829 = sshll.u32 [#allocation11], 4
      %s830 = int_to_ptr.vmem [resolvable:$true] %s829
      %s831 = sshll.u32 %s7, 4
      %s832 = int_to_ptr.hbm [resolvable:$true] %s831
      %834 = dma.vmem_to_hbm [thread:$0]  %s830, 32, %s832, [#allocation4]
    $region53: #{tpu_custom_call.1} parent=1 // pred_fallthru
      _
    // Predicated region
    $region54: #{tpu_custom_call.1} parent=1 // pred_check
      _
    $region55: #{tpu_custom_call.1} parent=1 // pred_check_branch
      %836 = sbr.rel (0) target = $region57
    $region56: #{tpu_custom_call.1} parent=1 // pred_region
      %838 = dma.done [#allocation4], 32
    $region57: #{tpu_custom_call.1} parent=1 // pred_fallthru
      _
    %839 = vsyncpa [#allocation3], 1
    %840 = vsyncpa [#allocation6], 1
    %841 = vsyncpa [#allocation9], 1
    %842 = vsyncpa [#allocation4], 1

</llo_original>
